<compile_context>
chip_gen: v7x
topology: tpu7x:2x2x1
jax: 0.10.0
libtpu: 0.0.40
codegen_flags: <defaults>
</compile_context>

<pallas_src>
import jax
import jax.numpy as jnp
from jax.experimental import pallas as pl
from jax.experimental.pallas import tpu as pltpu

# ----- module hyper-parameters (synthetic, deterministic) -----
VOCAB_SIZE = 50
TAG_SIZE = 8
EMBEDDING_DIM = 32
HIDDEN_DIM = 32          # total hidden (both directions)
BI_DIRECT = True
LSTM_LAYER = 1           # single layer
BI_FLAG = 2 if BI_DIRECT else 1
HID_DIR = HIDDEN_DIM // BI_FLAG   # per-direction hidden size
BATCH_SIZE = 2
MAX_LEN = 8
DROPOUT = 0.5            # identity at inference time


def bilstm_kernel(x_ref, mask_ref, wx_ref, b_ref, whh_ref, wtag_ref, tag_ref):
    """Fused bidirectional LSTM + hidden2tag + argmax.

    x_ref    : (T*B, E)        time-major embedded inputs, flattened
    mask_ref : (T, B, 1)  f32  1.0 where t < seq_len[b] (packed-seq semantics)
    wx_ref   : (E, 8*hd)       [W_ih_fwd^T | W_ih_bwd^T]
    b_ref    : (1, 8*hd)       [b_fwd | b_bwd]  (b_ih + b_hh per direction)
    whh_ref  : (2*hd, 8*hd)    block_diag(W_hh_fwd^T, W_hh_bwd^T)
    wtag_ref : (2*hd, TAG)
    tag_ref  : (T*B, 1) int32  argmax tag index per (t, b)
    """
    T, B, _ = mask_ref.shape
    hd = whh_ref.shape[0] // 2
    g4 = 4 * hd

    # ---- hoisted input projection: one lane-dense MXU op for all T, B, both dirs ----
    gates_x = (jnp.dot(x_ref[...], wx_ref[...], preferred_element_type=jnp.float32)
               + b_ref[...])                                       # (T*B, 8*hd)

    whh = whh_ref[...]                                             # (2*hd, 8*hd)

    h_f = jnp.zeros((B, hd), jnp.float32)
    c_f = jnp.zeros((B, hd), jnp.float32)
    h_b = jnp.zeros((B, hd), jnp.float32)
    c_b = jnp.zeros((B, hd), jnp.float32)

    hf_time = [None] * T
    hb_time = [None] * T

    # ---- fused fwd/bwd recurrence, fully unrolled (T is static and tiny) ----
    for s in range(T):
        tf = s               # forward-direction time index
        tb = T - 1 - s       # backward-direction time index

        # per-step input gates: fwd half at tf, bwd half at tb (static slices)
        gx = jnp.concatenate(
            [gates_x[tf * B:(tf + 1) * B, :g4],
             gates_x[tb * B:(tb + 1) * B, g4:]], axis=1)           # (B, 8*hd)

        h_cat = jnp.concatenate([h_f, h_b], axis=1)                # (B, 2*hd)
        gates = gx + jnp.dot(h_cat, whh, preferred_element_type=jnp.float32)

        # gate order per direction: [i, f, g, o] (PyTorch layout)
        sig = jax.nn.sigmoid(gates)                                # one wide EUP push
        i_g = jnp.concatenate([sig[:, 0 * hd:1 * hd], sig[:, g4 + 0 * hd:g4 + 1 * hd]], axis=1)
        f_g = jnp.concatenate([sig[:, 1 * hd:2 * hd], sig[:, g4 + 1 * hd:g4 + 2 * hd]], axis=1)
        o_g = jnp.concatenate([sig[:, 3 * hd:4 * hd], sig[:, g4 + 3 * hd:g4 + 4 * hd]], axis=1)
        g_g = jnp.tanh(jnp.concatenate(
            [gates[:, 2 * hd:3 * hd], gates[:, g4 + 2 * hd:g4 + 3 * hd]], axis=1))

        c_cat = jnp.concatenate([c_f, c_b], axis=1)
        c_new = f_g * c_cat + i_g * g_g
        h_new = o_g * jnp.tanh(c_new)

        m_f = mask_ref[tf] > 0.0                                   # (B, 1) bool
        m_b = mask_ref[tb] > 0.0

        h_f_new, h_b_new = h_new[:, :hd], h_new[:, hd:]
        c_f_new, c_b_new = c_new[:, :hd], c_new[:, hd:]

        # packed-sequence semantics: padded steps keep state, emit 0
        h_f = jnp.where(m_f, h_f_new, h_f)
        c_f = jnp.where(m_f, c_f_new, c_f)
        h_b = jnp.where(m_b, h_b_new, h_b)
        c_b = jnp.where(m_b, c_b_new, c_b)

        hf_time[tf] = jnp.where(m_f, h_f_new, 0.0)
        hb_time[tb] = jnp.where(m_b, h_b_new, 0.0)

    # ---- coalesced hidden2tag: one (T*B, 2*hd) x (2*hd, TAG) matmul ----
    h_full = jnp.concatenate(
        [jnp.concatenate([hf_time[t], hb_time[t]], axis=1) for t in range(T)],
        axis=0)                                                    # (T*B, 2*hd)
    logits = jnp.dot(h_full, wtag_ref[...],
                     preferred_element_type=jnp.float32)           # (T*B, TAG)

    # argmax over tags with first-index tie-breaking (matches torch.max)
    k = logits.shape[-1]
    mx = jnp.max(logits, axis=-1, keepdims=True)
    idx = jax.lax.broadcasted_iota(jnp.int32, logits.shape, dimension=1)
    cand = jnp.where(logits >= mx, idx, k)
    tag_ref[...] = jnp.min(cand, axis=-1, keepdims=True).astype(jnp.int32)


@jax.jit
def bilstm_forward(inputs, seq_lens, params):
    """inputs: (B, T) int32 token ids; seq_lens: (B,) int32. Returns tag_seq (B, T) int32."""
    emb = params['emb'][inputs]                                  # (B, T, E) embedding lookup (glue)
    # char_drop: dropout is identity at inference time.
    x = jnp.transpose(emb, (1, 0, 2)).astype(jnp.float32)        # (T, B, E) time-major
    T, B, E = x.shape
    x_flat = x.reshape(T * B, E)
    mask = (jnp.arange(T)[:, None] < seq_lens[None, :]).astype(jnp.float32)[..., None]  # (T,B,1)

    hd = HID_DIR
    # fused input-projection weights / biases: [fwd | bwd] along the gate axis
    wx = jnp.concatenate([params['wih_f'], params['wih_b']], axis=1)      # (E, 8*hd)
    b = jnp.concatenate([params['b_f'], params['b_b']], axis=1)           # (1, 8*hd)
    # block-diagonal recurrent weight so both directions share one MXU op per step
    whh_blk = jnp.zeros((2 * hd, 8 * hd), jnp.float32)
    whh_blk = whh_blk.at[:hd, :4 * hd].set(params['whh_f'])
    whh_blk = whh_blk.at[hd:, 4 * hd:].set(params['whh_b'])

    vmem = pl.BlockSpec(memory_space=pltpu.MemorySpace.VMEM)
    tag_flat = pl.pallas_call(
        bilstm_kernel,
        out_shape=jax.ShapeDtypeStruct((T * B, 1), jnp.int32),
        in_specs=[vmem] * 6,
        out_specs=vmem,
    )(x_flat, mask, wx, b, whh_blk, params['wtag'])
    # TODO(synk): for larger B/T, add a batch grid axis ("parallel") and pad B to a
    # multiple of 8 sublanes; unnecessary at the module's fixed B=2, T=8.
    return jnp.transpose(tag_flat.reshape(T, B), (1, 0))         # (B, T)


def init_params(key):
    """Deterministic synthetic parameters (shapes follow nn.LSTM / nn.Linear)."""
    ks = jax.random.split(key, 8)
    kscale = 1.0 / jnp.sqrt(jnp.float32(HID_DIR))

    def u(k, shape):
        return jax.random.uniform(k, shape, jnp.float32, -kscale, kscale)

    emb = jax.random.normal(ks[0], (VOCAB_SIZE, EMBEDDING_DIM), jnp.float32) * 0.1
    emb = emb.at[0].set(0.0)                             # padding_idx=0
    params = {
        'emb': emb,
        # per-direction LSTM weights, pre-transposed for x @ W layouts:
        #   W_ih^T: (E, 4*HID_DIR), W_hh^T: (HID_DIR, 4*HID_DIR), b = b_ih + b_hh: (1, 4*HID_DIR)
        'wih_f': u(ks[1], (EMBEDDING_DIM, 4 * HID_DIR)),
        'whh_f': u(ks[2], (HID_DIR, 4 * HID_DIR)),
        'b_f': u(ks[3], (1, 4 * HID_DIR)),
        'wih_b': u(ks[4], (EMBEDDING_DIM, 4 * HID_DIR)),
        'whh_b': u(ks[5], (HID_DIR, 4 * HID_DIR)),
        'b_b': u(ks[6], (1, 4 * HID_DIR)),
        # hidden2tag (no bias), transposed to (HIDDEN_DIM, TAG_SIZE)
        'wtag': u(ks[7], (HIDDEN_DIM, TAG_SIZE)),
    }
    return params


if __name__ == "__main__":
    key = jax.random.PRNGKey(0)
    pkey, dkey = jax.random.split(key)
    params = init_params(pkey)

    # deterministic example batch: (B, T) token ids, descending seq lengths
    seq_lens = jnp.array([MAX_LEN, 5], dtype=jnp.int32)
    tokens = jax.random.randint(dkey, (BATCH_SIZE, MAX_LEN), 1, VOCAB_SIZE, dtype=jnp.int32)
    # zero-pad positions past the sequence length (padding_idx=0)
    pad_mask = jnp.arange(MAX_LEN)[None, :] < seq_lens[:, None]
    tokens = jnp.where(pad_mask, tokens, 0)

    tag_seq = bilstm_forward(tokens, seq_lens, params)
    jax.block_until_ready(tag_seq)
    assert tag_seq.shape == (BATCH_SIZE, MAX_LEN) and tag_seq.dtype == jnp.int32
    print("KERNEL_OK")
</pallas_src>

<mosaic_0001>
module attributes {stable_mosaic.version = 11 : i64} {
  func.func @bilstm_kernel(%arg0: memref<16x32xf32, #tpu.memory_space<vmem>>, %arg1: memref<8x2x1xf32, #tpu.memory_space<vmem>>, %arg2: memref<32x128xf32, #tpu.memory_space<vmem>>, %arg3: memref<1x128xf32, #tpu.memory_space<vmem>>, %arg4: memref<32x128xf32, #tpu.memory_space<vmem>>, %arg5: memref<32x8xf32, #tpu.memory_space<vmem>>, %arg6: memref<16x1xi32, #tpu.memory_space<vmem>>) attributes {dimension_semantics = [], scalar_prefetch = 0 : i64, scratch_operands = 0 : i64, tpu.core_type = #tpu.core_type<tc>} {
    %c0 = arith.constant 0 : index
    %c0_0 = arith.constant 0 : index
    %0 = vector.load %arg0[%c0, %c0_0] : memref<16x32xf32, #tpu.memory_space<vmem>>, vector<16x32xf32>
    %c0_1 = arith.constant 0 : index
    %c0_2 = arith.constant 0 : index
    %1 = vector.load %arg2[%c0_1, %c0_2] : memref<32x128xf32, #tpu.memory_space<vmem>>, vector<32x128xf32>
    %cst = arith.constant dense<0.000000e+00> : vector<16x128xf32>
    %2 = tpu.matmul %0, %1, %cst {dimension_numbers = #tpu.dot_dimension_numbers<[1], [0], [0], [1], [0, 0, 1, 1], [], []>} : vector<16x32xf32>, vector<32x128xf32>, vector<16x128xf32> -> vector<16x128xf32>
    %c0_3 = arith.constant 0 : index
    %c0_4 = arith.constant 0 : index
    %3 = vector.load %arg3[%c0_3, %c0_4] : memref<1x128xf32, #tpu.memory_space<vmem>>, vector<1x128xf32>
    %4 = vector.broadcast %3 : vector<1x128xf32> to vector<16x128xf32>
    %5 = arith.addf %2, %4 : vector<16x128xf32>
    %c0_5 = arith.constant 0 : index
    %c0_6 = arith.constant 0 : index
    %6 = vector.load %arg4[%c0_5, %c0_6] : memref<32x128xf32, #tpu.memory_space<vmem>>, vector<32x128xf32>
    %cst_7 = arith.constant 0.000000e+00 : f32
    %7 = vector.broadcast %cst_7 : f32 to vector<2x16xf32>
    %cst_8 = arith.constant 0.000000e+00 : f32
    %8 = vector.broadcast %cst_8 : f32 to vector<2x16xf32>
    %cst_9 = arith.constant 0.000000e+00 : f32
    %9 = vector.broadcast %cst_9 : f32 to vector<2x16xf32>
    %cst_10 = arith.constant 0.000000e+00 : f32
    %10 = vector.broadcast %cst_10 : f32 to vector<2x16xf32>
    %11 = vector.extract_strided_slice %5 {offsets = [0, 0], sizes = [2, 64], strides = [1, 1]} : vector<16x128xf32> to vector<2x64xf32>
    %12 = vector.extract_strided_slice %5 {offsets = [14, 64], sizes = [2, 64], strides = [1, 1]} : vector<16x128xf32> to vector<2x64xf32>
    %13 = tpu.concatenate %11, %12 in 1 : vector<2x64xf32>, vector<2x64xf32> -> vector<2x128xf32>
    %14 = tpu.concatenate %7, %9 in 1 : vector<2x16xf32>, vector<2x16xf32> -> vector<2x32xf32>
    %cst_11 = arith.constant dense<0.000000e+00> : vector<2x128xf32>
    %15 = tpu.matmul %14, %6, %cst_11 {dimension_numbers = #tpu.dot_dimension_numbers<[1], [0], [0], [1], [0, 0, 1, 1], [], []>} : vector<2x32xf32>, vector<32x128xf32>, vector<2x128xf32> -> vector<2x128xf32>
    %16 = arith.addf %13, %15 : vector<2x128xf32>
    %17 = arith.negf %16 : vector<2x128xf32>
    %18 = math.exp %17 : vector<2x128xf32>
    %cst_12 = arith.constant 1.000000e+00 : f32
    %19 = vector.broadcast %cst_12 : f32 to vector<2x128xf32>
    %20 = arith.addf %19, %18 : vector<2x128xf32>
    %21 = arith.divf %19, %20 : vector<2x128xf32>
    %22 = vector.extract_strided_slice %21 {offsets = [0, 0], sizes = [2, 16], strides = [1, 1]} : vector<2x128xf32> to vector<2x16xf32>
    %23 = vector.extract_strided_slice %21 {offsets = [0, 64], sizes = [2, 16], strides = [1, 1]} : vector<2x128xf32> to vector<2x16xf32>
    %24 = tpu.concatenate %22, %23 in 1 : vector<2x16xf32>, vector<2x16xf32> -> vector<2x32xf32>
    %25 = vector.extract_strided_slice %21 {offsets = [0, 16], sizes = [2, 16], strides = [1, 1]} : vector<2x128xf32> to vector<2x16xf32>
    %26 = vector.extract_strided_slice %21 {offsets = [0, 80], sizes = [2, 16], strides = [1, 1]} : vector<2x128xf32> to vector<2x16xf32>
    %27 = tpu.concatenate %25, %26 in 1 : vector<2x16xf32>, vector<2x16xf32> -> vector<2x32xf32>
    %28 = vector.extract_strided_slice %21 {offsets = [0, 48], sizes = [2, 16], strides = [1, 1]} : vector<2x128xf32> to vector<2x16xf32>
    %29 = vector.extract_strided_slice %21 {offsets = [0, 112], sizes = [2, 16], strides = [1, 1]} : vector<2x128xf32> to vector<2x16xf32>
    %30 = tpu.concatenate %28, %29 in 1 : vector<2x16xf32>, vector<2x16xf32> -> vector<2x32xf32>
    %31 = vector.extract_strided_slice %16 {offsets = [0, 32], sizes = [2, 16], strides = [1, 1]} : vector<2x128xf32> to vector<2x16xf32>
    %32 = vector.extract_strided_slice %16 {offsets = [0, 96], sizes = [2, 16], strides = [1, 1]} : vector<2x128xf32> to vector<2x16xf32>
    %33 = tpu.concatenate %31, %32 in 1 : vector<2x16xf32>, vector<2x16xf32> -> vector<2x32xf32>
    %34 = math.tanh %33 : vector<2x32xf32>
    %35 = tpu.concatenate %8, %10 in 1 : vector<2x16xf32>, vector<2x16xf32> -> vector<2x32xf32>
    %36 = arith.mulf %27, %35 : vector<2x32xf32>
    %37 = arith.mulf %24, %34 : vector<2x32xf32>
    %38 = arith.addf %36, %37 : vector<2x32xf32>
    %39 = math.tanh %38 : vector<2x32xf32>
    %40 = arith.mulf %30, %39 : vector<2x32xf32>
    %c0_13 = arith.constant 0 : index
    %c0_14 = arith.constant 0 : index
    %c0_15 = arith.constant 0 : index
    %41 = vector.load %arg1[%c0_13, %c0_14, %c0_15] : memref<8x2x1xf32, #tpu.memory_space<vmem>>, vector<1x2x1xf32>
    %42 = vector.shape_cast %41 : vector<1x2x1xf32> to vector<2x1xf32>
    %cst_16 = arith.constant 0.000000e+00 : f32
    %43 = vector.broadcast %cst_16 : f32 to vector<2x1xf32>
    %44 = arith.cmpf ogt, %42, %43 : vector<2x1xf32>
    %c7 = arith.constant 7 : index
    %c0_17 = arith.constant 0 : index
    %c0_18 = arith.constant 0 : index
    %45 = vector.load %arg1[%c7, %c0_17, %c0_18] : memref<8x2x1xf32, #tpu.memory_space<vmem>>, vector<1x2x1xf32>
    %46 = vector.shape_cast %45 : vector<1x2x1xf32> to vector<2x1xf32>
    %cst_19 = arith.constant 0.000000e+00 : f32
    %47 = vector.broadcast %cst_19 : f32 to vector<2x1xf32>
    %48 = arith.cmpf ogt, %46, %47 : vector<2x1xf32>
    %49 = vector.extract_strided_slice %40 {offsets = [0, 0], sizes = [2, 16], strides = [1, 1]} : vector<2x32xf32> to vector<2x16xf32>
    %50 = vector.extract_strided_slice %40 {offsets = [0, 16], sizes = [2, 16], strides = [1, 1]} : vector<2x32xf32> to vector<2x16xf32>
    %51 = vector.extract_strided_slice %38 {offsets = [0, 0], sizes = [2, 16], strides = [1, 1]} : vector<2x32xf32> to vector<2x16xf32>
    %52 = vector.extract_strided_slice %38 {offsets = [0, 16], sizes = [2, 16], strides = [1, 1]} : vector<2x32xf32> to vector<2x16xf32>
    %53 = vector.shape_cast %44 : vector<2x1xi1> to vector<2x1xi1>
    %54 = vector.broadcast %53 : vector<2x1xi1> to vector<2x16xi1>
    %55 = arith.select %54, %49, %7 : vector<2x16xi1>, vector<2x16xf32>
    %56 = vector.shape_cast %44 : vector<2x1xi1> to vector<2x1xi1>
    %57 = vector.broadcast %56 : vector<2x1xi1> to vector<2x16xi1>
    %58 = arith.select %57, %51, %8 : vector<2x16xi1>, vector<2x16xf32>
    %59 = vector.shape_cast %48 : vector<2x1xi1> to vector<2x1xi1>
    %60 = vector.broadcast %59 : vector<2x1xi1> to vector<2x16xi1>
    %61 = arith.select %60, %50, %9 : vector<2x16xi1>, vector<2x16xf32>
    %62 = vector.shape_cast %48 : vector<2x1xi1> to vector<2x1xi1>
    %63 = vector.broadcast %62 : vector<2x1xi1> to vector<2x16xi1>
    %64 = arith.select %63, %52, %10 : vector<2x16xi1>, vector<2x16xf32>
    %cst_20 = arith.constant 0.000000e+00 : f32
    %65 = vector.shape_cast %44 : vector<2x1xi1> to vector<2x1xi1>
    %66 = vector.broadcast %65 : vector<2x1xi1> to vector<2x16xi1>
    %67 = vector.broadcast %cst_20 : f32 to vector<2x16xf32>
    %68 = arith.select %66, %49, %67 : vector<2x16xi1>, vector<2x16xf32>
    %cst_21 = arith.constant 0.000000e+00 : f32
    %69 = vector.shape_cast %48 : vector<2x1xi1> to vector<2x1xi1>
    %70 = vector.broadcast %69 : vector<2x1xi1> to vector<2x16xi1>
    %71 = vector.broadcast %cst_21 : f32 to vector<2x16xf32>
    %72 = arith.select %70, %50, %71 : vector<2x16xi1>, vector<2x16xf32>
    %73 = vector.extract_strided_slice %5 {offsets = [2, 0], sizes = [2, 64], strides = [1, 1]} : vector<16x128xf32> to vector<2x64xf32>
    %74 = vector.extract_strided_slice %5 {offsets = [12, 64], sizes = [2, 64], strides = [1, 1]} : vector<16x128xf32> to vector<2x64xf32>
    %75 = tpu.concatenate %73, %74 in 1 : vector<2x64xf32>, vector<2x64xf32> -> vector<2x128xf32>
    %76 = tpu.concatenate %55, %61 in 1 : vector<2x16xf32>, vector<2x16xf32> -> vector<2x32xf32>
    %cst_22 = arith.constant dense<0.000000e+00> : vector<2x128xf32>
    %77 = tpu.matmul %76, %6, %cst_22 {dimension_numbers = #tpu.dot_dimension_numbers<[1], [0], [0], [1], [0, 0, 1, 1], [], []>} : vector<2x32xf32>, vector<32x128xf32>, vector<2x128xf32> -> vector<2x128xf32>
    %78 = arith.addf %75, %77 : vector<2x128xf32>
    %79 = arith.negf %78 : vector<2x128xf32>
    %80 = math.exp %79 : vector<2x128xf32>
    %cst_23 = arith.constant 1.000000e+00 : f32
    %81 = vector.broadcast %cst_23 : f32 to vector<2x128xf32>
    %82 = arith.addf %81, %80 : vector<2x128xf32>
    %83 = arith.divf %81, %82 : vector<2x128xf32>
    %84 = vector.extract_strided_slice %83 {offsets = [0, 0], sizes = [2, 16], strides = [1, 1]} : vector<2x128xf32> to vector<2x16xf32>
    %85 = vector.extract_strided_slice %83 {offsets = [0, 64], sizes = [2, 16], strides = [1, 1]} : vector<2x128xf32> to vector<2x16xf32>
    %86 = tpu.concatenate %84, %85 in 1 : vector<2x16xf32>, vector<2x16xf32> -> vector<2x32xf32>
    %87 = vector.extract_strided_slice %83 {offsets = [0, 16], sizes = [2, 16], strides = [1, 1]} : vector<2x128xf32> to vector<2x16xf32>
    %88 = vector.extract_strided_slice %83 {offsets = [0, 80], sizes = [2, 16], strides = [1, 1]} : vector<2x128xf32> to vector<2x16xf32>
    %89 = tpu.concatenate %87, %88 in 1 : vector<2x16xf32>, vector<2x16xf32> -> vector<2x32xf32>
    %90 = vector.extract_strided_slice %83 {offsets = [0, 48], sizes = [2, 16], strides = [1, 1]} : vector<2x128xf32> to vector<2x16xf32>
    %91 = vector.extract_strided_slice %83 {offsets = [0, 112], sizes = [2, 16], strides = [1, 1]} : vector<2x128xf32> to vector<2x16xf32>
    %92 = tpu.concatenate %90, %91 in 1 : vector<2x16xf32>, vector<2x16xf32> -> vector<2x32xf32>
    %93 = vector.extract_strided_slice %78 {offsets = [0, 32], sizes = [2, 16], strides = [1, 1]} : vector<2x128xf32> to vector<2x16xf32>
    %94 = vector.extract_strided_slice %78 {offsets = [0, 96], sizes = [2, 16], strides = [1, 1]} : vector<2x128xf32> to vector<2x16xf32>
    %95 = tpu.concatenate %93, %94 in 1 : vector<2x16xf32>, vector<2x16xf32> -> vector<2x32xf32>
    %96 = math.tanh %95 : vector<2x32xf32>
    %97 = tpu.concatenate %58, %64 in 1 : vector<2x16xf32>, vector<2x16xf32> -> vector<2x32xf32>
    %98 = arith.mulf %89, %97 : vector<2x32xf32>
    %99 = arith.mulf %86, %96 : vector<2x32xf32>
    %100 = arith.addf %98, %99 : vector<2x32xf32>
    %101 = math.tanh %100 : vector<2x32xf32>
    %102 = arith.mulf %92, %101 : vector<2x32xf32>
    %c1 = arith.constant 1 : index
    %c0_24 = arith.constant 0 : index
    %c0_25 = arith.constant 0 : index
    %103 = vector.load %arg1[%c1, %c0_24, %c0_25] : memref<8x2x1xf32, #tpu.memory_space<vmem>>, vector<1x2x1xf32>
    %104 = vector.shape_cast %103 : vector<1x2x1xf32> to vector<2x1xf32>
    %cst_26 = arith.constant 0.000000e+00 : f32
    %105 = vector.broadcast %cst_26 : f32 to vector<2x1xf32>
    %106 = arith.cmpf ogt, %104, %105 : vector<2x1xf32>
    %c6 = arith.constant 6 : index
    %c0_27 = arith.constant 0 : index
    %c0_28 = arith.constant 0 : index
    %107 = vector.load %arg1[%c6, %c0_27, %c0_28] : memref<8x2x1xf32, #tpu.memory_space<vmem>>, vector<1x2x1xf32>
    %108 = vector.shape_cast %107 : vector<1x2x1xf32> to vector<2x1xf32>
    %cst_29 = arith.constant 0.000000e+00 : f32
    %109 = vector.broadcast %cst_29 : f32 to vector<2x1xf32>
    %110 = arith.cmpf ogt, %108, %109 : vector<2x1xf32>
    %111 = vector.extract_strided_slice %102 {offsets = [0, 0], sizes = [2, 16], strides = [1, 1]} : vector<2x32xf32> to vector<2x16xf32>
    %112 = vector.extract_strided_slice %102 {offsets = [0, 16], sizes = [2, 16], strides = [1, 1]} : vector<2x32xf32> to vector<2x16xf32>
    %113 = vector.extract_strided_slice %100 {offsets = [0, 0], sizes = [2, 16], strides = [1, 1]} : vector<2x32xf32> to vector<2x16xf32>
    %114 = vector.extract_strided_slice %100 {offsets = [0, 16], sizes = [2, 16], strides = [1, 1]} : vector<2x32xf32> to vector<2x16xf32>
    %115 = vector.shape_cast %106 : vector<2x1xi1> to vector<2x1xi1>
    %116 = vector.broadcast %115 : vector<2x1xi1> to vector<2x16xi1>
    %117 = arith.select %116, %111, %55 : vector<2x16xi1>, vector<2x16xf32>
    %118 = vector.shape_cast %106 : vector<2x1xi1> to vector<2x1xi1>
    %119 = vector.broadcast %118 : vector<2x1xi1> to vector<2x16xi1>
    %120 = arith.select %119, %113, %58 : vector<2x16xi1>, vector<2x16xf32>
    %121 = vector.shape_cast %110 : vector<2x1xi1> to vector<2x1xi1>
    %122 = vector.broadcast %121 : vector<2x1xi1> to vector<2x16xi1>
    %123 = arith.select %122, %112, %61 : vector<2x16xi1>, vector<2x16xf32>
    %124 = vector.shape_cast %110 : vector<2x1xi1> to vector<2x1xi1>
    %125 = vector.broadcast %124 : vector<2x1xi1> to vector<2x16xi1>
    %126 = arith.select %125, %114, %64 : vector<2x16xi1>, vector<2x16xf32>
    %cst_30 = arith.constant 0.000000e+00 : f32
    %127 = vector.shape_cast %106 : vector<2x1xi1> to vector<2x1xi1>
    %128 = vector.broadcast %127 : vector<2x1xi1> to vector<2x16xi1>
    %129 = vector.broadcast %cst_30 : f32 to vector<2x16xf32>
    %130 = arith.select %128, %111, %129 : vector<2x16xi1>, vector<2x16xf32>
    %cst_31 = arith.constant 0.000000e+00 : f32
    %131 = vector.shape_cast %110 : vector<2x1xi1> to vector<2x1xi1>
    %132 = vector.broadcast %131 : vector<2x1xi1> to vector<2x16xi1>
    %133 = vector.broadcast %cst_31 : f32 to vector<2x16xf32>
    %134 = arith.select %132, %112, %133 : vector<2x16xi1>, vector<2x16xf32>
    %135 = vector.extract_strided_slice %5 {offsets = [4, 0], sizes = [2, 64], strides = [1, 1]} : vector<16x128xf32> to vector<2x64xf32>
    %136 = vector.extract_strided_slice %5 {offsets = [10, 64], sizes = [2, 64], strides = [1, 1]} : vector<16x128xf32> to vector<2x64xf32>
    %137 = tpu.concatenate %135, %136 in 1 : vector<2x64xf32>, vector<2x64xf32> -> vector<2x128xf32>
    %138 = tpu.concatenate %117, %123 in 1 : vector<2x16xf32>, vector<2x16xf32> -> vector<2x32xf32>
    %cst_32 = arith.constant dense<0.000000e+00> : vector<2x128xf32>
    %139 = tpu.matmul %138, %6, %cst_32 {dimension_numbers = #tpu.dot_dimension_numbers<[1], [0], [0], [1], [0, 0, 1, 1], [], []>} : vector<2x32xf32>, vector<32x128xf32>, vector<2x128xf32> -> vector<2x128xf32>
    %140 = arith.addf %137, %139 : vector<2x128xf32>
    %141 = arith.negf %140 : vector<2x128xf32>
    %142 = math.exp %141 : vector<2x128xf32>
    %cst_33 = arith.constant 1.000000e+00 : f32
    %143 = vector.broadcast %cst_33 : f32 to vector<2x128xf32>
    %144 = arith.addf %143, %142 : vector<2x128xf32>
    %145 = arith.divf %143, %144 : vector<2x128xf32>
    %146 = vector.extract_strided_slice %145 {offsets = [0, 0], sizes = [2, 16], strides = [1, 1]} : vector<2x128xf32> to vector<2x16xf32>
    %147 = vector.extract_strided_slice %145 {offsets = [0, 64], sizes = [2, 16], strides = [1, 1]} : vector<2x128xf32> to vector<2x16xf32>
    %148 = tpu.concatenate %146, %147 in 1 : vector<2x16xf32>, vector<2x16xf32> -> vector<2x32xf32>
    %149 = vector.extract_strided_slice %145 {offsets = [0, 16], sizes = [2, 16], strides = [1, 1]} : vector<2x128xf32> to vector<2x16xf32>
    %150 = vector.extract_strided_slice %145 {offsets = [0, 80], sizes = [2, 16], strides = [1, 1]} : vector<2x128xf32> to vector<2x16xf32>
    %151 = tpu.concatenate %149, %150 in 1 : vector<2x16xf32>, vector<2x16xf32> -> vector<2x32xf32>
    %152 = vector.extract_strided_slice %145 {offsets = [0, 48], sizes = [2, 16], strides = [1, 1]} : vector<2x128xf32> to vector<2x16xf32>
    %153 = vector.extract_strided_slice %145 {offsets = [0, 112], sizes = [2, 16], strides = [1, 1]} : vector<2x128xf32> to vector<2x16xf32>
    %154 = tpu.concatenate %152, %153 in 1 : vector<2x16xf32>, vector<2x16xf32> -> vector<2x32xf32>
    %155 = vector.extract_strided_slice %140 {offsets = [0, 32], sizes = [2, 16], strides = [1, 1]} : vector<2x128xf32> to vector<2x16xf32>
    %156 = vector.extract_strided_slice %140 {offsets = [0, 96], sizes = [2, 16], strides = [1, 1]} : vector<2x128xf32> to vector<2x16xf32>
    %157 = tpu.concatenate %155, %156 in 1 : vector<2x16xf32>, vector<2x16xf32> -> vector<2x32xf32>
    %158 = math.tanh %157 : vector<2x32xf32>
    %159 = tpu.concatenate %120, %126 in 1 : vector<2x16xf32>, vector<2x16xf32> -> vector<2x32xf32>
    %160 = arith.mulf %151, %159 : vector<2x32xf32>
    %161 = arith.mulf %148, %158 : vector<2x32xf32>
    %162 = arith.addf %160, %161 : vector<2x32xf32>
    %163 = math.tanh %162 : vector<2x32xf32>
    %164 = arith.mulf %154, %163 : vector<2x32xf32>
    %c2 = arith.constant 2 : index
    %c0_34 = arith.constant 0 : index
    %c0_35 = arith.constant 0 : index
    %165 = vector.load %arg1[%c2, %c0_34, %c0_35] : memref<8x2x1xf32, #tpu.memory_space<vmem>>, vector<1x2x1xf32>
    %166 = vector.shape_cast %165 : vector<1x2x1xf32> to vector<2x1xf32>
    %cst_36 = arith.constant 0.000000e+00 : f32
    %167 = vector.broadcast %cst_36 : f32 to vector<2x1xf32>
    %168 = arith.cmpf ogt, %166, %167 : vector<2x1xf32>
    %c5 = arith.constant 5 : index
    %c0_37 = arith.constant 0 : index
    %c0_38 = arith.constant 0 : index
    %169 = vector.load %arg1[%c5, %c0_37, %c0_38] : memref<8x2x1xf32, #tpu.memory_space<vmem>>, vector<1x2x1xf32>
    %170 = vector.shape_cast %169 : vector<1x2x1xf32> to vector<2x1xf32>
    %cst_39 = arith.constant 0.000000e+00 : f32
    %171 = vector.broadcast %cst_39 : f32 to vector<2x1xf32>
    %172 = arith.cmpf ogt, %170, %171 : vector<2x1xf32>
    %173 = vector.extract_strided_slice %164 {offsets = [0, 0], sizes = [2, 16], strides = [1, 1]} : vector<2x32xf32> to vector<2x16xf32>
    %174 = vector.extract_strided_slice %164 {offsets = [0, 16], sizes = [2, 16], strides = [1, 1]} : vector<2x32xf32> to vector<2x16xf32>
    %175 = vector.extract_strided_slice %162 {offsets = [0, 0], sizes = [2, 16], strides = [1, 1]} : vector<2x32xf32> to vector<2x16xf32>
    %176 = vector.extract_strided_slice %162 {offsets = [0, 16], sizes = [2, 16], strides = [1, 1]} : vector<2x32xf32> to vector<2x16xf32>
    %177 = vector.shape_cast %168 : vector<2x1xi1> to vector<2x1xi1>
    %178 = vector.broadcast %177 : vector<2x1xi1> to vector<2x16xi1>
    %179 = arith.select %178, %173, %117 : vector<2x16xi1>, vector<2x16xf32>
    %180 = vector.shape_cast %168 : vector<2x1xi1> to vector<2x1xi1>
    %181 = vector.broadcast %180 : vector<2x1xi1> to vector<2x16xi1>
    %182 = arith.select %181, %175, %120 : vector<2x16xi1>, vector<2x16xf32>
    %183 = vector.shape_cast %172 : vector<2x1xi1> to vector<2x1xi1>
    %184 = vector.broadcast %183 : vector<2x1xi1> to vector<2x16xi1>
    %185 = arith.select %184, %174, %123 : vector<2x16xi1>, vector<2x16xf32>
    %186 = vector.shape_cast %172 : vector<2x1xi1> to vector<2x1xi1>
    %187 = vector.broadcast %186 : vector<2x1xi1> to vector<2x16xi1>
    %188 = arith.select %187, %176, %126 : vector<2x16xi1>, vector<2x16xf32>
    %cst_40 = arith.constant 0.000000e+00 : f32
    %189 = vector.shape_cast %168 : vector<2x1xi1> to vector<2x1xi1>
    %190 = vector.broadcast %189 : vector<2x1xi1> to vector<2x16xi1>
    %191 = vector.broadcast %cst_40 : f32 to vector<2x16xf32>
    %192 = arith.select %190, %173, %191 : vector<2x16xi1>, vector<2x16xf32>
    %cst_41 = arith.constant 0.000000e+00 : f32
    %193 = vector.shape_cast %172 : vector<2x1xi1> to vector<2x1xi1>
    %194 = vector.broadcast %193 : vector<2x1xi1> to vector<2x16xi1>
    %195 = vector.broadcast %cst_41 : f32 to vector<2x16xf32>
    %196 = arith.select %194, %174, %195 : vector<2x16xi1>, vector<2x16xf32>
    %197 = vector.extract_strided_slice %5 {offsets = [6, 0], sizes = [2, 64], strides = [1, 1]} : vector<16x128xf32> to vector<2x64xf32>
    %198 = vector.extract_strided_slice %5 {offsets = [8, 64], sizes = [2, 64], strides = [1, 1]} : vector<16x128xf32> to vector<2x64xf32>
    %199 = tpu.concatenate %197, %198 in 1 : vector<2x64xf32>, vector<2x64xf32> -> vector<2x128xf32>
    %200 = tpu.concatenate %179, %185 in 1 : vector<2x16xf32>, vector<2x16xf32> -> vector<2x32xf32>
    %cst_42 = arith.constant dense<0.000000e+00> : vector<2x128xf32>
    %201 = tpu.matmul %200, %6, %cst_42 {dimension_numbers = #tpu.dot_dimension_numbers<[1], [0], [0], [1], [0, 0, 1, 1], [], []>} : vector<2x32xf32>, vector<32x128xf32>, vector<2x128xf32> -> vector<2x128xf32>
    %202 = arith.addf %199, %201 : vector<2x128xf32>
    %203 = arith.negf %202 : vector<2x128xf32>
    %204 = math.exp %203 : vector<2x128xf32>
    %cst_43 = arith.constant 1.000000e+00 : f32
    %205 = vector.broadcast %cst_43 : f32 to vector<2x128xf32>
    %206 = arith.addf %205, %204 : vector<2x128xf32>
    %207 = arith.divf %205, %206 : vector<2x128xf32>
    %208 = vector.extract_strided_slice %207 {offsets = [0, 0], sizes = [2, 16], strides = [1, 1]} : vector<2x128xf32> to vector<2x16xf32>
    %209 = vector.extract_strided_slice %207 {offsets = [0, 64], sizes = [2, 16], strides = [1, 1]} : vector<2x128xf32> to vector<2x16xf32>
    %210 = tpu.concatenate %208, %209 in 1 : vector<2x16xf32>, vector<2x16xf32> -> vector<2x32xf32>
    %211 = vector.extract_strided_slice %207 {offsets = [0, 16], sizes = [2, 16], strides = [1, 1]} : vector<2x128xf32> to vector<2x16xf32>
    %212 = vector.extract_strided_slice %207 {offsets = [0, 80], sizes = [2, 16], strides = [1, 1]} : vector<2x128xf32> to vector<2x16xf32>
    %213 = tpu.concatenate %211, %212 in 1 : vector<2x16xf32>, vector<2x16xf32> -> vector<2x32xf32>
    %214 = vector.extract_strided_slice %207 {offsets = [0, 48], sizes = [2, 16], strides = [1, 1]} : vector<2x128xf32> to vector<2x16xf32>
    %215 = vector.extract_strided_slice %207 {offsets = [0, 112], sizes = [2, 16], strides = [1, 1]} : vector<2x128xf32> to vector<2x16xf32>
    %216 = tpu.concatenate %214, %215 in 1 : vector<2x16xf32>, vector<2x16xf32> -> vector<2x32xf32>
    %217 = vector.extract_strided_slice %202 {offsets = [0, 32], sizes = [2, 16], strides = [1, 1]} : vector<2x128xf32> to vector<2x16xf32>
    %218 = vector.extract_strided_slice %202 {offsets = [0, 96], sizes = [2, 16], strides = [1, 1]} : vector<2x128xf32> to vector<2x16xf32>
    %219 = tpu.concatenate %217, %218 in 1 : vector<2x16xf32>, vector<2x16xf32> -> vector<2x32xf32>
    %220 = math.tanh %219 : vector<2x32xf32>
    %221 = tpu.concatenate %182, %188 in 1 : vector<2x16xf32>, vector<2x16xf32> -> vector<2x32xf32>
    %222 = arith.mulf %213, %221 : vector<2x32xf32>
    %223 = arith.mulf %210, %220 : vector<2x32xf32>
    %224 = arith.addf %222, %223 : vector<2x32xf32>
    %225 = math.tanh %224 : vector<2x32xf32>
    %226 = arith.mulf %216, %225 : vector<2x32xf32>
    %c3 = arith.constant 3 : index
    %c0_44 = arith.constant 0 : index
    %c0_45 = arith.constant 0 : index
    %227 = vector.load %arg1[%c3, %c0_44, %c0_45] : memref<8x2x1xf32, #tpu.memory_space<vmem>>, vector<1x2x1xf32>
    %228 = vector.shape_cast %227 : vector<1x2x1xf32> to vector<2x1xf32>
    %cst_46 = arith.constant 0.000000e+00 : f32
    %229 = vector.broadcast %cst_46 : f32 to vector<2x1xf32>
    %230 = arith.cmpf ogt, %228, %229 : vector<2x1xf32>
    %c4 = arith.constant 4 : index
    %c0_47 = arith.constant 0 : index
    %c0_48 = arith.constant 0 : index
    %231 = vector.load %arg1[%c4, %c0_47, %c0_48] : memref<8x2x1xf32, #tpu.memory_space<vmem>>, vector<1x2x1xf32>
    %232 = vector.shape_cast %231 : vector<1x2x1xf32> to vector<2x1xf32>
    %cst_49 = arith.constant 0.000000e+00 : f32
    %233 = vector.broadcast %cst_49 : f32 to vector<2x1xf32>
    %234 = arith.cmpf ogt, %232, %233 : vector<2x1xf32>
    %235 = vector.extract_strided_slice %226 {offsets = [0, 0], sizes = [2, 16], strides = [1, 1]} : vector<2x32xf32> to vector<2x16xf32>
    %236 = vector.extract_strided_slice %226 {offsets = [0, 16], sizes = [2, 16], strides = [1, 1]} : vector<2x32xf32> to vector<2x16xf32>
    %237 = vector.extract_strided_slice %224 {offsets = [0, 0], sizes = [2, 16], strides = [1, 1]} : vector<2x32xf32> to vector<2x16xf32>
    %238 = vector.extract_strided_slice %224 {offsets = [0, 16], sizes = [2, 16], strides = [1, 1]} : vector<2x32xf32> to vector<2x16xf32>
    %239 = vector.shape_cast %230 : vector<2x1xi1> to vector<2x1xi1>
    %240 = vector.broadcast %239 : vector<2x1xi1> to vector<2x16xi1>
    %241 = arith.select %240, %235, %179 : vector<2x16xi1>, vector<2x16xf32>
    %242 = vector.shape_cast %230 : vector<2x1xi1> to vector<2x1xi1>
    %243 = vector.broadcast %242 : vector<2x1xi1> to vector<2x16xi1>
    %244 = arith.select %243, %237, %182 : vector<2x16xi1>, vector<2x16xf32>
    %245 = vector.shape_cast %234 : vector<2x1xi1> to vector<2x1xi1>
    %246 = vector.broadcast %245 : vector<2x1xi1> to vector<2x16xi1>
    %247 = arith.select %246, %236, %185 : vector<2x16xi1>, vector<2x16xf32>
    %248 = vector.shape_cast %234 : vector<2x1xi1> to vector<2x1xi1>
    %249 = vector.broadcast %248 : vector<2x1xi1> to vector<2x16xi1>
    %250 = arith.select %249, %238, %188 : vector<2x16xi1>, vector<2x16xf32>
    %cst_50 = arith.constant 0.000000e+00 : f32
    %251 = vector.shape_cast %230 : vector<2x1xi1> to vector<2x1xi1>
    %252 = vector.broadcast %251 : vector<2x1xi1> to vector<2x16xi1>
    %253 = vector.broadcast %cst_50 : f32 to vector<2x16xf32>
    %254 = arith.select %252, %235, %253 : vector<2x16xi1>, vector<2x16xf32>
    %cst_51 = arith.constant 0.000000e+00 : f32
    %255 = vector.shape_cast %234 : vector<2x1xi1> to vector<2x1xi1>
    %256 = vector.broadcast %255 : vector<2x1xi1> to vector<2x16xi1>
    %257 = vector.broadcast %cst_51 : f32 to vector<2x16xf32>
    %258 = arith.select %256, %236, %257 : vector<2x16xi1>, vector<2x16xf32>
    %259 = vector.extract_strided_slice %5 {offsets = [8, 0], sizes = [2, 64], strides = [1, 1]} : vector<16x128xf32> to vector<2x64xf32>
    %260 = vector.extract_strided_slice %5 {offsets = [6, 64], sizes = [2, 64], strides = [1, 1]} : vector<16x128xf32> to vector<2x64xf32>
    %261 = tpu.concatenate %259, %260 in 1 : vector<2x64xf32>, vector<2x64xf32> -> vector<2x128xf32>
    %262 = tpu.concatenate %241, %247 in 1 : vector<2x16xf32>, vector<2x16xf32> -> vector<2x32xf32>
    %cst_52 = arith.constant dense<0.000000e+00> : vector<2x128xf32>
    %263 = tpu.matmul %262, %6, %cst_52 {dimension_numbers = #tpu.dot_dimension_numbers<[1], [0], [0], [1], [0, 0, 1, 1], [], []>} : vector<2x32xf32>, vector<32x128xf32>, vector<2x128xf32> -> vector<2x128xf32>
    %264 = arith.addf %261, %263 : vector<2x128xf32>
    %265 = arith.negf %264 : vector<2x128xf32>
    %266 = math.exp %265 : vector<2x128xf32>
    %cst_53 = arith.constant 1.000000e+00 : f32
    %267 = vector.broadcast %cst_53 : f32 to vector<2x128xf32>
    %268 = arith.addf %267, %266 : vector<2x128xf32>
    %269 = arith.divf %267, %268 : vector<2x128xf32>
    %270 = vector.extract_strided_slice %269 {offsets = [0, 0], sizes = [2, 16], strides = [1, 1]} : vector<2x128xf32> to vector<2x16xf32>
    %271 = vector.extract_strided_slice %269 {offsets = [0, 64], sizes = [2, 16], strides = [1, 1]} : vector<2x128xf32> to vector<2x16xf32>
    %272 = tpu.concatenate %270, %271 in 1 : vector<2x16xf32>, vector<2x16xf32> -> vector<2x32xf32>
    %273 = vector.extract_strided_slice %269 {offsets = [0, 16], sizes = [2, 16], strides = [1, 1]} : vector<2x128xf32> to vector<2x16xf32>
    %274 = vector.extract_strided_slice %269 {offsets = [0, 80], sizes = [2, 16], strides = [1, 1]} : vector<2x128xf32> to vector<2x16xf32>
    %275 = tpu.concatenate %273, %274 in 1 : vector<2x16xf32>, vector<2x16xf32> -> vector<2x32xf32>
    %276 = vector.extract_strided_slice %269 {offsets = [0, 48], sizes = [2, 16], strides = [1, 1]} : vector<2x128xf32> to vector<2x16xf32>
    %277 = vector.extract_strided_slice %269 {offsets = [0, 112], sizes = [2, 16], strides = [1, 1]} : vector<2x128xf32> to vector<2x16xf32>
    %278 = tpu.concatenate %276, %277 in 1 : vector<2x16xf32>, vector<2x16xf32> -> vector<2x32xf32>
    %279 = vector.extract_strided_slice %264 {offsets = [0, 32], sizes = [2, 16], strides = [1, 1]} : vector<2x128xf32> to vector<2x16xf32>
    %280 = vector.extract_strided_slice %264 {offsets = [0, 96], sizes = [2, 16], strides = [1, 1]} : vector<2x128xf32> to vector<2x16xf32>
    %281 = tpu.concatenate %279, %280 in 1 : vector<2x16xf32>, vector<2x16xf32> -> vector<2x32xf32>
    %282 = math.tanh %281 : vector<2x32xf32>
    %283 = tpu.concatenate %244, %250 in 1 : vector<2x16xf32>, vector<2x16xf32> -> vector<2x32xf32>
    %284 = arith.mulf %275, %283 : vector<2x32xf32>
    %285 = arith.mulf %272, %282 : vector<2x32xf32>
    %286 = arith.addf %284, %285 : vector<2x32xf32>
    %287 = math.tanh %286 : vector<2x32xf32>
    %288 = arith.mulf %278, %287 : vector<2x32xf32>
    %c4_54 = arith.constant 4 : index
    %c0_55 = arith.constant 0 : index
    %c0_56 = arith.constant 0 : index
    %289 = vector.load %arg1[%c4_54, %c0_55, %c0_56] : memref<8x2x1xf32, #tpu.memory_space<vmem>>, vector<1x2x1xf32>
    %290 = vector.shape_cast %289 : vector<1x2x1xf32> to vector<2x1xf32>
    %cst_57 = arith.constant 0.000000e+00 : f32
    %291 = vector.broadcast %cst_57 : f32 to vector<2x1xf32>
    %292 = arith.cmpf ogt, %290, %291 : vector<2x1xf32>
    %c3_58 = arith.constant 3 : index
    %c0_59 = arith.constant 0 : index
    %c0_60 = arith.constant 0 : index
    %293 = vector.load %arg1[%c3_58, %c0_59, %c0_60] : memref<8x2x1xf32, #tpu.memory_space<vmem>>, vector<1x2x1xf32>
    %294 = vector.shape_cast %293 : vector<1x2x1xf32> to vector<2x1xf32>
    %cst_61 = arith.constant 0.000000e+00 : f32
    %295 = vector.broadcast %cst_61 : f32 to vector<2x1xf32>
    %296 = arith.cmpf ogt, %294, %295 : vector<2x1xf32>
    %297 = vector.extract_strided_slice %288 {offsets = [0, 0], sizes = [2, 16], strides = [1, 1]} : vector<2x32xf32> to vector<2x16xf32>
    %298 = vector.extract_strided_slice %288 {offsets = [0, 16], sizes = [2, 16], strides = [1, 1]} : vector<2x32xf32> to vector<2x16xf32>
    %299 = vector.extract_strided_slice %286 {offsets = [0, 0], sizes = [2, 16], strides = [1, 1]} : vector<2x32xf32> to vector<2x16xf32>
    %300 = vector.extract_strided_slice %286 {offsets = [0, 16], sizes = [2, 16], strides = [1, 1]} : vector<2x32xf32> to vector<2x16xf32>
    %301 = vector.shape_cast %292 : vector<2x1xi1> to vector<2x1xi1>
    %302 = vector.broadcast %301 : vector<2x1xi1> to vector<2x16xi1>
    %303 = arith.select %302, %297, %241 : vector<2x16xi1>, vector<2x16xf32>
    %304 = vector.shape_cast %292 : vector<2x1xi1> to vector<2x1xi1>
    %305 = vector.broadcast %304 : vector<2x1xi1> to vector<2x16xi1>
    %306 = arith.select %305, %299, %244 : vector<2x16xi1>, vector<2x16xf32>
    %307 = vector.shape_cast %296 : vector<2x1xi1> to vector<2x1xi1>
    %308 = vector.broadcast %307 : vector<2x1xi1> to vector<2x16xi1>
    %309 = arith.select %308, %298, %247 : vector<2x16xi1>, vector<2x16xf32>
    %310 = vector.shape_cast %296 : vector<2x1xi1> to vector<2x1xi1>
    %311 = vector.broadcast %310 : vector<2x1xi1> to vector<2x16xi1>
    %312 = arith.select %311, %300, %250 : vector<2x16xi1>, vector<2x16xf32>
    %cst_62 = arith.constant 0.000000e+00 : f32
    %313 = vector.shape_cast %292 : vector<2x1xi1> to vector<2x1xi1>
    %314 = vector.broadcast %313 : vector<2x1xi1> to vector<2x16xi1>
    %315 = vector.broadcast %cst_62 : f32 to vector<2x16xf32>
    %316 = arith.select %314, %297, %315 : vector<2x16xi1>, vector<2x16xf32>
    %cst_63 = arith.constant 0.000000e+00 : f32
    %317 = vector.shape_cast %296 : vector<2x1xi1> to vector<2x1xi1>
    %318 = vector.broadcast %317 : vector<2x1xi1> to vector<2x16xi1>
    %319 = vector.broadcast %cst_63 : f32 to vector<2x16xf32>
    %320 = arith.select %318, %298, %319 : vector<2x16xi1>, vector<2x16xf32>
    %321 = vector.extract_strided_slice %5 {offsets = [10, 0], sizes = [2, 64], strides = [1, 1]} : vector<16x128xf32> to vector<2x64xf32>
    %322 = vector.extract_strided_slice %5 {offsets = [4, 64], sizes = [2, 64], strides = [1, 1]} : vector<16x128xf32> to vector<2x64xf32>
    %323 = tpu.concatenate %321, %322 in 1 : vector<2x64xf32>, vector<2x64xf32> -> vector<2x128xf32>
    %324 = tpu.concatenate %303, %309 in 1 : vector<2x16xf32>, vector<2x16xf32> -> vector<2x32xf32>
    %cst_64 = arith.constant dense<0.000000e+00> : vector<2x128xf32>
    %325 = tpu.matmul %324, %6, %cst_64 {dimension_numbers = #tpu.dot_dimension_numbers<[1], [0], [0], [1], [0, 0, 1, 1], [], []>} : vector<2x32xf32>, vector<32x128xf32>, vector<2x128xf32> -> vector<2x128xf32>
    %326 = arith.addf %323, %325 : vector<2x128xf32>
    %327 = arith.negf %326 : vector<2x128xf32>
    %328 = math.exp %327 : vector<2x128xf32>
    %cst_65 = arith.constant 1.000000e+00 : f32
    %329 = vector.broadcast %cst_65 : f32 to vector<2x128xf32>
    %330 = arith.addf %329, %328 : vector<2x128xf32>
    %331 = arith.divf %329, %330 : vector<2x128xf32>
    %332 = vector.extract_strided_slice %331 {offsets = [0, 0], sizes = [2, 16], strides = [1, 1]} : vector<2x128xf32> to vector<2x16xf32>
    %333 = vector.extract_strided_slice %331 {offsets = [0, 64], sizes = [2, 16], strides = [1, 1]} : vector<2x128xf32> to vector<2x16xf32>
    %334 = tpu.concatenate %332, %333 in 1 : vector<2x16xf32>, vector<2x16xf32> -> vector<2x32xf32>
    %335 = vector.extract_strided_slice %331 {offsets = [0, 16], sizes = [2, 16], strides = [1, 1]} : vector<2x128xf32> to vector<2x16xf32>
    %336 = vector.extract_strided_slice %331 {offsets = [0, 80], sizes = [2, 16], strides = [1, 1]} : vector<2x128xf32> to vector<2x16xf32>
    %337 = tpu.concatenate %335, %336 in 1 : vector<2x16xf32>, vector<2x16xf32> -> vector<2x32xf32>
    %338 = vector.extract_strided_slice %331 {offsets = [0, 48], sizes = [2, 16], strides = [1, 1]} : vector<2x128xf32> to vector<2x16xf32>
    %339 = vector.extract_strided_slice %331 {offsets = [0, 112], sizes = [2, 16], strides = [1, 1]} : vector<2x128xf32> to vector<2x16xf32>
    %340 = tpu.concatenate %338, %339 in 1 : vector<2x16xf32>, vector<2x16xf32> -> vector<2x32xf32>
    %341 = vector.extract_strided_slice %326 {offsets = [0, 32], sizes = [2, 16], strides = [1, 1]} : vector<2x128xf32> to vector<2x16xf32>
    %342 = vector.extract_strided_slice %326 {offsets = [0, 96], sizes = [2, 16], strides = [1, 1]} : vector<2x128xf32> to vector<2x16xf32>
    %343 = tpu.concatenate %341, %342 in 1 : vector<2x16xf32>, vector<2x16xf32> -> vector<2x32xf32>
    %344 = math.tanh %343 : vector<2x32xf32>
    %345 = tpu.concatenate %306, %312 in 1 : vector<2x16xf32>, vector<2x16xf32> -> vector<2x32xf32>
    %346 = arith.mulf %337, %345 : vector<2x32xf32>
    %347 = arith.mulf %334, %344 : vector<2x32xf32>
    %348 = arith.addf %346, %347 : vector<2x32xf32>
    %349 = math.tanh %348 : vector<2x32xf32>
    %350 = arith.mulf %340, %349 : vector<2x32xf32>
    %c5_66 = arith.constant 5 : index
    %c0_67 = arith.constant 0 : index
    %c0_68 = arith.constant 0 : index
    %351 = vector.load %arg1[%c5_66, %c0_67, %c0_68] : memref<8x2x1xf32, #tpu.memory_space<vmem>>, vector<1x2x1xf32>
    %352 = vector.shape_cast %351 : vector<1x2x1xf32> to vector<2x1xf32>
    %cst_69 = arith.constant 0.000000e+00 : f32
    %353 = vector.broadcast %cst_69 : f32 to vector<2x1xf32>
    %354 = arith.cmpf ogt, %352, %353 : vector<2x1xf32>
    %c2_70 = arith.constant 2 : index
    %c0_71 = arith.constant 0 : index
    %c0_72 = arith.constant 0 : index
    %355 = vector.load %arg1[%c2_70, %c0_71, %c0_72] : memref<8x2x1xf32, #tpu.memory_space<vmem>>, vector<1x2x1xf32>
    %356 = vector.shape_cast %355 : vector<1x2x1xf32> to vector<2x1xf32>
    %cst_73 = arith.constant 0.000000e+00 : f32
    %357 = vector.broadcast %cst_73 : f32 to vector<2x1xf32>
    %358 = arith.cmpf ogt, %356, %357 : vector<2x1xf32>
    %359 = vector.extract_strided_slice %350 {offsets = [0, 0], sizes = [2, 16], strides = [1, 1]} : vector<2x32xf32> to vector<2x16xf32>
    %360 = vector.extract_strided_slice %350 {offsets = [0, 16], sizes = [2, 16], strides = [1, 1]} : vector<2x32xf32> to vector<2x16xf32>
    %361 = vector.extract_strided_slice %348 {offsets = [0, 0], sizes = [2, 16], strides = [1, 1]} : vector<2x32xf32> to vector<2x16xf32>
    %362 = vector.extract_strided_slice %348 {offsets = [0, 16], sizes = [2, 16], strides = [1, 1]} : vector<2x32xf32> to vector<2x16xf32>
    %363 = vector.shape_cast %354 : vector<2x1xi1> to vector<2x1xi1>
    %364 = vector.broadcast %363 : vector<2x1xi1> to vector<2x16xi1>
    %365 = arith.select %364, %359, %303 : vector<2x16xi1>, vector<2x16xf32>
    %366 = vector.shape_cast %354 : vector<2x1xi1> to vector<2x1xi1>
    %367 = vector.broadcast %366 : vector<2x1xi1> to vector<2x16xi1>
    %368 = arith.select %367, %361, %306 : vector<2x16xi1>, vector<2x16xf32>
    %369 = vector.shape_cast %358 : vector<2x1xi1> to vector<2x1xi1>
    %370 = vector.broadcast %369 : vector<2x1xi1> to vector<2x16xi1>
    %371 = arith.select %370, %360, %309 : vector<2x16xi1>, vector<2x16xf32>
    %372 = vector.shape_cast %358 : vector<2x1xi1> to vector<2x1xi1>
    %373 = vector.broadcast %372 : vector<2x1xi1> to vector<2x16xi1>
    %374 = arith.select %373, %362, %312 : vector<2x16xi1>, vector<2x16xf32>
    %cst_74 = arith.constant 0.000000e+00 : f32
    %375 = vector.shape_cast %354 : vector<2x1xi1> to vector<2x1xi1>
    %376 = vector.broadcast %375 : vector<2x1xi1> to vector<2x16xi1>
    %377 = vector.broadcast %cst_74 : f32 to vector<2x16xf32>
    %378 = arith.select %376, %359, %377 : vector<2x16xi1>, vector<2x16xf32>
    %cst_75 = arith.constant 0.000000e+00 : f32
    %379 = vector.shape_cast %358 : vector<2x1xi1> to vector<2x1xi1>
    %380 = vector.broadcast %379 : vector<2x1xi1> to vector<2x16xi1>
    %381 = vector.broadcast %cst_75 : f32 to vector<2x16xf32>
    %382 = arith.select %380, %360, %381 : vector<2x16xi1>, vector<2x16xf32>
    %383 = vector.extract_strided_slice %5 {offsets = [12, 0], sizes = [2, 64], strides = [1, 1]} : vector<16x128xf32> to vector<2x64xf32>
    %384 = vector.extract_strided_slice %5 {offsets = [2, 64], sizes = [2, 64], strides = [1, 1]} : vector<16x128xf32> to vector<2x64xf32>
    %385 = tpu.concatenate %383, %384 in 1 : vector<2x64xf32>, vector<2x64xf32> -> vector<2x128xf32>
    %386 = tpu.concatenate %365, %371 in 1 : vector<2x16xf32>, vector<2x16xf32> -> vector<2x32xf32>
    %cst_76 = arith.constant dense<0.000000e+00> : vector<2x128xf32>
    %387 = tpu.matmul %386, %6, %cst_76 {dimension_numbers = #tpu.dot_dimension_numbers<[1], [0], [0], [1], [0, 0, 1, 1], [], []>} : vector<2x32xf32>, vector<32x128xf32>, vector<2x128xf32> -> vector<2x128xf32>
    %388 = arith.addf %385, %387 : vector<2x128xf32>
    %389 = arith.negf %388 : vector<2x128xf32>
    %390 = math.exp %389 : vector<2x128xf32>
    %cst_77 = arith.constant 1.000000e+00 : f32
    %391 = vector.broadcast %cst_77 : f32 to vector<2x128xf32>
    %392 = arith.addf %391, %390 : vector<2x128xf32>
    %393 = arith.divf %391, %392 : vector<2x128xf32>
    %394 = vector.extract_strided_slice %393 {offsets = [0, 0], sizes = [2, 16], strides = [1, 1]} : vector<2x128xf32> to vector<2x16xf32>
    %395 = vector.extract_strided_slice %393 {offsets = [0, 64], sizes = [2, 16], strides = [1, 1]} : vector<2x128xf32> to vector<2x16xf32>
    %396 = tpu.concatenate %394, %395 in 1 : vector<2x16xf32>, vector<2x16xf32> -> vector<2x32xf32>
    %397 = vector.extract_strided_slice %393 {offsets = [0, 16], sizes = [2, 16], strides = [1, 1]} : vector<2x128xf32> to vector<2x16xf32>
    %398 = vector.extract_strided_slice %393 {offsets = [0, 80], sizes = [2, 16], strides = [1, 1]} : vector<2x128xf32> to vector<2x16xf32>
    %399 = tpu.concatenate %397, %398 in 1 : vector<2x16xf32>, vector<2x16xf32> -> vector<2x32xf32>
    %400 = vector.extract_strided_slice %393 {offsets = [0, 48], sizes = [2, 16], strides = [1, 1]} : vector<2x128xf32> to vector<2x16xf32>
    %401 = vector.extract_strided_slice %393 {offsets = [0, 112], sizes = [2, 16], strides = [1, 1]} : vector<2x128xf32> to vector<2x16xf32>
    %402 = tpu.concatenate %400, %401 in 1 : vector<2x16xf32>, vector<2x16xf32> -> vector<2x32xf32>
    %403 = vector.extract_strided_slice %388 {offsets = [0, 32], sizes = [2, 16], strides = [1, 1]} : vector<2x128xf32> to vector<2x16xf32>
    %404 = vector.extract_strided_slice %388 {offsets = [0, 96], sizes = [2, 16], strides = [1, 1]} : vector<2x128xf32> to vector<2x16xf32>
    %405 = tpu.concatenate %403, %404 in 1 : vector<2x16xf32>, vector<2x16xf32> -> vector<2x32xf32>
    %406 = math.tanh %405 : vector<2x32xf32>
    %407 = tpu.concatenate %368, %374 in 1 : vector<2x16xf32>, vector<2x16xf32> -> vector<2x32xf32>
    %408 = arith.mulf %399, %407 : vector<2x32xf32>
    %409 = arith.mulf %396, %406 : vector<2x32xf32>
    %410 = arith.addf %408, %409 : vector<2x32xf32>
    %411 = math.tanh %410 : vector<2x32xf32>
    %412 = arith.mulf %402, %411 : vector<2x32xf32>
    %c6_78 = arith.constant 6 : index
    %c0_79 = arith.constant 0 : index
    %c0_80 = arith.constant 0 : index
    %413 = vector.load %arg1[%c6_78, %c0_79, %c0_80] : memref<8x2x1xf32, #tpu.memory_space<vmem>>, vector<1x2x1xf32>
    %414 = vector.shape_cast %413 : vector<1x2x1xf32> to vector<2x1xf32>
    %cst_81 = arith.constant 0.000000e+00 : f32
    %415 = vector.broadcast %cst_81 : f32 to vector<2x1xf32>
    %416 = arith.cmpf ogt, %414, %415 : vector<2x1xf32>
    %c1_82 = arith.constant 1 : index
    %c0_83 = arith.constant 0 : index
    %c0_84 = arith.constant 0 : index
    %417 = vector.load %arg1[%c1_82, %c0_83, %c0_84] : memref<8x2x1xf32, #tpu.memory_space<vmem>>, vector<1x2x1xf32>
    %418 = vector.shape_cast %417 : vector<1x2x1xf32> to vector<2x1xf32>
    %cst_85 = arith.constant 0.000000e+00 : f32
    %419 = vector.broadcast %cst_85 : f32 to vector<2x1xf32>
    %420 = arith.cmpf ogt, %418, %419 : vector<2x1xf32>
    %421 = vector.extract_strided_slice %412 {offsets = [0, 0], sizes = [2, 16], strides = [1, 1]} : vector<2x32xf32> to vector<2x16xf32>
    %422 = vector.extract_strided_slice %412 {offsets = [0, 16], sizes = [2, 16], strides = [1, 1]} : vector<2x32xf32> to vector<2x16xf32>
    %423 = vector.extract_strided_slice %410 {offsets = [0, 0], sizes = [2, 16], strides = [1, 1]} : vector<2x32xf32> to vector<2x16xf32>
    %424 = vector.extract_strided_slice %410 {offsets = [0, 16], sizes = [2, 16], strides = [1, 1]} : vector<2x32xf32> to vector<2x16xf32>
    %425 = vector.shape_cast %416 : vector<2x1xi1> to vector<2x1xi1>
    %426 = vector.broadcast %425 : vector<2x1xi1> to vector<2x16xi1>
    %427 = arith.select %426, %421, %365 : vector<2x16xi1>, vector<2x16xf32>
    %428 = vector.shape_cast %416 : vector<2x1xi1> to vector<2x1xi1>
    %429 = vector.broadcast %428 : vector<2x1xi1> to vector<2x16xi1>
    %430 = arith.select %429, %423, %368 : vector<2x16xi1>, vector<2x16xf32>
    %431 = vector.shape_cast %420 : vector<2x1xi1> to vector<2x1xi1>
    %432 = vector.broadcast %431 : vector<2x1xi1> to vector<2x16xi1>
    %433 = arith.select %432, %422, %371 : vector<2x16xi1>, vector<2x16xf32>
    %434 = vector.shape_cast %420 : vector<2x1xi1> to vector<2x1xi1>
    %435 = vector.broadcast %434 : vector<2x1xi1> to vector<2x16xi1>
    %436 = arith.select %435, %424, %374 : vector<2x16xi1>, vector<2x16xf32>
    %cst_86 = arith.constant 0.000000e+00 : f32
    %437 = vector.shape_cast %416 : vector<2x1xi1> to vector<2x1xi1>
    %438 = vector.broadcast %437 : vector<2x1xi1> to vector<2x16xi1>
    %439 = vector.broadcast %cst_86 : f32 to vector<2x16xf32>
    %440 = arith.select %438, %421, %439 : vector<2x16xi1>, vector<2x16xf32>
    %cst_87 = arith.constant 0.000000e+00 : f32
    %441 = vector.shape_cast %420 : vector<2x1xi1> to vector<2x1xi1>
    %442 = vector.broadcast %441 : vector<2x1xi1> to vector<2x16xi1>
    %443 = vector.broadcast %cst_87 : f32 to vector<2x16xf32>
    %444 = arith.select %442, %422, %443 : vector<2x16xi1>, vector<2x16xf32>
    %445 = vector.extract_strided_slice %5 {offsets = [14, 0], sizes = [2, 64], strides = [1, 1]} : vector<16x128xf32> to vector<2x64xf32>
    %446 = vector.extract_strided_slice %5 {offsets = [0, 64], sizes = [2, 64], strides = [1, 1]} : vector<16x128xf32> to vector<2x64xf32>
    %447 = tpu.concatenate %445, %446 in 1 : vector<2x64xf32>, vector<2x64xf32> -> vector<2x128xf32>
    %448 = tpu.concatenate %427, %433 in 1 : vector<2x16xf32>, vector<2x16xf32> -> vector<2x32xf32>
    %cst_88 = arith.constant dense<0.000000e+00> : vector<2x128xf32>
    %449 = tpu.matmul %448, %6, %cst_88 {dimension_numbers = #tpu.dot_dimension_numbers<[1], [0], [0], [1], [0, 0, 1, 1], [], []>} : vector<2x32xf32>, vector<32x128xf32>, vector<2x128xf32> -> vector<2x128xf32>
    %450 = arith.addf %447, %449 : vector<2x128xf32>
    %451 = arith.negf %450 : vector<2x128xf32>
    %452 = math.exp %451 : vector<2x128xf32>
    %cst_89 = arith.constant 1.000000e+00 : f32
    %453 = vector.broadcast %cst_89 : f32 to vector<2x128xf32>
    %454 = arith.addf %453, %452 : vector<2x128xf32>
    %455 = arith.divf %453, %454 : vector<2x128xf32>
    %456 = vector.extract_strided_slice %455 {offsets = [0, 0], sizes = [2, 16], strides = [1, 1]} : vector<2x128xf32> to vector<2x16xf32>
    %457 = vector.extract_strided_slice %455 {offsets = [0, 64], sizes = [2, 16], strides = [1, 1]} : vector<2x128xf32> to vector<2x16xf32>
    %458 = tpu.concatenate %456, %457 in 1 : vector<2x16xf32>, vector<2x16xf32> -> vector<2x32xf32>
    %459 = vector.extract_strided_slice %455 {offsets = [0, 16], sizes = [2, 16], strides = [1, 1]} : vector<2x128xf32> to vector<2x16xf32>
    %460 = vector.extract_strided_slice %455 {offsets = [0, 80], sizes = [2, 16], strides = [1, 1]} : vector<2x128xf32> to vector<2x16xf32>
    %461 = tpu.concatenate %459, %460 in 1 : vector<2x16xf32>, vector<2x16xf32> -> vector<2x32xf32>
    %462 = vector.extract_strided_slice %455 {offsets = [0, 48], sizes = [2, 16], strides = [1, 1]} : vector<2x128xf32> to vector<2x16xf32>
    %463 = vector.extract_strided_slice %455 {offsets = [0, 112], sizes = [2, 16], strides = [1, 1]} : vector<2x128xf32> to vector<2x16xf32>
    %464 = tpu.concatenate %462, %463 in 1 : vector<2x16xf32>, vector<2x16xf32> -> vector<2x32xf32>
    %465 = vector.extract_strided_slice %450 {offsets = [0, 32], sizes = [2, 16], strides = [1, 1]} : vector<2x128xf32> to vector<2x16xf32>
    %466 = vector.extract_strided_slice %450 {offsets = [0, 96], sizes = [2, 16], strides = [1, 1]} : vector<2x128xf32> to vector<2x16xf32>
    %467 = tpu.concatenate %465, %466 in 1 : vector<2x16xf32>, vector<2x16xf32> -> vector<2x32xf32>
    %468 = math.tanh %467 : vector<2x32xf32>
    %469 = tpu.concatenate %430, %436 in 1 : vector<2x16xf32>, vector<2x16xf32> -> vector<2x32xf32>
    %470 = arith.mulf %461, %469 : vector<2x32xf32>
    %471 = arith.mulf %458, %468 : vector<2x32xf32>
    %472 = arith.addf %470, %471 : vector<2x32xf32>
    %473 = math.tanh %472 : vector<2x32xf32>
    %474 = arith.mulf %464, %473 : vector<2x32xf32>
    %c7_90 = arith.constant 7 : index
    %c0_91 = arith.constant 0 : index
    %c0_92 = arith.constant 0 : index
    %475 = vector.load %arg1[%c7_90, %c0_91, %c0_92] : memref<8x2x1xf32, #tpu.memory_space<vmem>>, vector<1x2x1xf32>
    %476 = vector.shape_cast %475 : vector<1x2x1xf32> to vector<2x1xf32>
    %cst_93 = arith.constant 0.000000e+00 : f32
    %477 = vector.broadcast %cst_93 : f32 to vector<2x1xf32>
    %478 = arith.cmpf ogt, %476, %477 : vector<2x1xf32>
    %c0_94 = arith.constant 0 : index
    %c0_95 = arith.constant 0 : index
    %c0_96 = arith.constant 0 : index
    %479 = vector.load %arg1[%c0_94, %c0_95, %c0_96] : memref<8x2x1xf32, #tpu.memory_space<vmem>>, vector<1x2x1xf32>
    %480 = vector.shape_cast %479 : vector<1x2x1xf32> to vector<2x1xf32>
    %cst_97 = arith.constant 0.000000e+00 : f32
    %481 = vector.broadcast %cst_97 : f32 to vector<2x1xf32>
    %482 = arith.cmpf ogt, %480, %481 : vector<2x1xf32>
    %483 = vector.extract_strided_slice %474 {offsets = [0, 0], sizes = [2, 16], strides = [1, 1]} : vector<2x32xf32> to vector<2x16xf32>
    %484 = vector.extract_strided_slice %474 {offsets = [0, 16], sizes = [2, 16], strides = [1, 1]} : vector<2x32xf32> to vector<2x16xf32>
    %cst_98 = arith.constant 0.000000e+00 : f32
    %485 = vector.shape_cast %478 : vector<2x1xi1> to vector<2x1xi1>
    %486 = vector.broadcast %485 : vector<2x1xi1> to vector<2x16xi1>
    %487 = vector.broadcast %cst_98 : f32 to vector<2x16xf32>
    %488 = arith.select %486, %483, %487 : vector<2x16xi1>, vector<2x16xf32>
    %cst_99 = arith.constant 0.000000e+00 : f32
    %489 = vector.shape_cast %482 : vector<2x1xi1> to vector<2x1xi1>
    %490 = vector.broadcast %489 : vector<2x1xi1> to vector<2x16xi1>
    %491 = vector.broadcast %cst_99 : f32 to vector<2x16xf32>
    %492 = arith.select %490, %484, %491 : vector<2x16xi1>, vector<2x16xf32>
    %493 = tpu.concatenate %68, %492 in 1 : vector<2x16xf32>, vector<2x16xf32> -> vector<2x32xf32>
    %494 = tpu.concatenate %130, %444 in 1 : vector<2x16xf32>, vector<2x16xf32> -> vector<2x32xf32>
    %495 = tpu.concatenate %192, %382 in 1 : vector<2x16xf32>, vector<2x16xf32> -> vector<2x32xf32>
    %496 = tpu.concatenate %254, %320 in 1 : vector<2x16xf32>, vector<2x16xf32> -> vector<2x32xf32>
    %497 = tpu.concatenate %316, %258 in 1 : vector<2x16xf32>, vector<2x16xf32> -> vector<2x32xf32>
    %498 = tpu.concatenate %378, %196 in 1 : vector<2x16xf32>, vector<2x16xf32> -> vector<2x32xf32>
    %499 = tpu.concatenate %440, %134 in 1 : vector<2x16xf32>, vector<2x16xf32> -> vector<2x32xf32>
    %500 = tpu.concatenate %488, %72 in 1 : vector<2x16xf32>, vector<2x16xf32> -> vector<2x32xf32>
    %501 = tpu.concatenate %493, %494, %495, %496, %497, %498, %499, %500 in 0 : vector<2x32xf32>, vector<2x32xf32>, vector<2x32xf32>, vector<2x32xf32>, vector<2x32xf32>, vector<2x32xf32>, vector<2x32xf32>, vector<2x32xf32> -> vector<16x32xf32>
    %c0_100 = arith.constant 0 : index
    %c0_101 = arith.constant 0 : index
    %502 = vector.load %arg5[%c0_100, %c0_101] : memref<32x8xf32, #tpu.memory_space<vmem>>, vector<32x8xf32>
    %cst_102 = arith.constant dense<0.000000e+00> : vector<16x8xf32>
    %503 = tpu.matmul %501, %502, %cst_102 {dimension_numbers = #tpu.dot_dimension_numbers<[1], [0], [0], [1], [0, 0, 1, 1], [], []>} : vector<16x32xf32>, vector<32x8xf32>, vector<16x8xf32> -> vector<16x8xf32>
    %cst_103 = arith.constant dense<0xFF800000> : vector<16xf32>
    %504 = vector.multi_reduction <maximumf>, %503, %cst_103 [1] : vector<16x8xf32> to vector<16xf32>
    %505 = vector.shape_cast %504 : vector<16xf32> to vector<16x1xf32>
    %506 = tpu.iota {dimensions = array<i32: 1>} : vector<16x8xi32>
    %507 = vector.broadcast %505 : vector<16x1xf32> to vector<16x8xf32>
    %508 = arith.cmpf oge, %503, %507 : vector<16x8xf32>
    %c8_i32 = arith.constant 8 : i32
    %509 = vector.broadcast %c8_i32 : i32 to vector<16x8xi32>
    %510 = arith.select %508, %506, %509 : vector<16x8xi1>, vector<16x8xi32>
    %cst_104 = arith.constant dense<2147483647> : vector<16xi32>
    %511 = vector.multi_reduction <minsi>, %510, %cst_104 [1] : vector<16x8xi32> to vector<16xi32>
    %512 = vector.shape_cast %511 : vector<16xi32> to vector<16x1xi32>
    %c0_105 = arith.constant 0 : index
    %c0_106 = arith.constant 0 : index
    %513 = vector.load %arg6[%c0_105, %c0_106] : memref<16x1xi32, #tpu.memory_space<vmem>>, vector<16x1xi32>
    tpu.vector_store %arg6[%c0_105, %c0_106], %512 {strides = array<i32>} : memref<16x1xi32, #tpu.memory_space<vmem>>, vector<16x1xi32>,
    return
  }
}

</mosaic_0001>

<llo_original>
// kernel: bilstm_forward.1
$region0: #{bilstm_forward.1}
  #allocation0 [shape = 'u32[]', space=smem, size = 0x4, offset = 0x4, fixed_abs, tag = 'smem constant byte address 0x4 - core index']
  #allocation1 [shape = 'u32[144,128]{1,0:T(1,128)}', space=vmem, size = 0x12000, scoped, tag = 'internal scratch']
  %s0 = inlined_call_operand.vmem [shape: f32[16,32], index: 0, kind: input, shape index: {}]
  %s1 = inlined_call_operand.vmem [shape: f32[8,2,1], index: 1, kind: input, shape index: {}]
  %s2 = inlined_call_operand.vmem [shape: f32[32,128], index: 2, kind: input, shape index: {}]
  %s3 = inlined_call_operand.vmem [shape: f32[1,128], index: 3, kind: input, shape index: {}]
  %s4 = inlined_call_operand.vmem [shape: f32[32,128], index: 4, kind: input, shape index: {}]
  %s5 = inlined_call_operand.vmem [shape: f32[32,8], index: 5, kind: input, shape index: {}]
  %s6 = inlined_call_operand.vmem [shape: s32[16,1], index: 6, kind: output, shape index: {}]
  %s7 = sld [smem:[#allocation0]]
  $region34: #{bilstm_forward.1} parent=0
    _
  %s9 = ssub.s32 1, %s7
  %s10 = scalar_select 0, %s9, %s7
  // Predicated region
  $region2: #{bilstm_forward.1} parent=0 // pred_check
    _
  $region3: #{bilstm_forward.1} parent=0 // pred_check_branch
    %12 = sbr.rel (0) target = $region5
  $region4: #{bilstm_forward.1} parent=0 // pred_region
    _
  $region5: #{bilstm_forward.1} parent=0 // pred_fallthru
    _
  // Predicated region
  $region6: #{bilstm_forward.1} parent=0 // pred_check
    _
  $region7: #{bilstm_forward.1} parent=0 // pred_check_branch
    %14 = sbr.rel (0) target = $region9
  $region8: #{bilstm_forward.1} parent=0 // pred_region
    _
  $region9: #{bilstm_forward.1} parent=0 // pred_fallthru
    _
  // Predicated region
  $region10: #{bilstm_forward.1} parent=0 // pred_check
    _
  $region11: #{bilstm_forward.1} parent=0 // pred_check_branch
    %16 = sbr.rel (0) target = $region13
  $region12: #{bilstm_forward.1} parent=0 // pred_region
    _
  $region13: #{bilstm_forward.1} parent=0 // pred_fallthru
    _
  // Predicated region
  $region14: #{bilstm_forward.1} parent=0 // pred_check
    _
  $region15: #{bilstm_forward.1} parent=0 // pred_check_branch
    %18 = sbr.rel (0) target = $region17
  $region16: #{bilstm_forward.1} parent=0 // pred_region
    _
  $region17: #{bilstm_forward.1} parent=0 // pred_fallthru
    _
  // Predicated region
  $region18: #{bilstm_forward.1} parent=0 // pred_check
    _
  $region19: #{bilstm_forward.1} parent=0 // pred_check_branch
    %20 = sbr.rel (0) target = $region21
  $region20: #{bilstm_forward.1} parent=0 // pred_region
    _
  $region21: #{bilstm_forward.1} parent=0 // pred_fallthru
    _
  // Predicated region
  $region22: #{bilstm_forward.1} parent=0 // pred_check
    _
  $region23: #{bilstm_forward.1} parent=0 // pred_check_branch
    %22 = sbr.rel (0) target = $region25
  $region24: #{bilstm_forward.1} parent=0 // pred_region
    _
  $region25: #{bilstm_forward.1} parent=0 // pred_fallthru
    _
  %v23 = vld [vmem:[%s0] sm:$0xff]
  %v24 = vld [vmem:[%s0 + $0x8] sm:$0xff]
  %v25 = vld [vmem:[%s2] sm:$0xff]
  %v26 = vld [vmem:[%s2 + $0x8] sm:$0xff]
  %v27 = vld [vmem:[%s2 + $0x10] sm:$0xff]
  %v28 = vld [vmem:[%s2 + $0x18] sm:$0xff]
  %v29 = vld [vmem:[%s3] sm:$0x1]
  %v31 = vlaneseq
  %v32 = vshrl.u32 %v31, 7
  %v33 = vsub.s32 0, %v32
  %v34 = vrot.slane %v29, %v33
  %vm36 = vcmask 261120
  %v38 = vsel %vm36, %v23, 0
  %v41 = vsel %vm36, %v24, 0
  %43 = vmatprep.subr.mxu0 0.0
  %44 = vmatpush1.msra.mxu0 %v25
  %45 = vmatprep.subr.mxu0 0.0
  %46 = vmatpush1.msra.mxu0 %v26
  %47 = vmatprep.subr.mxu0 0.0
  %48 = vmatpush1.msra.mxu0 %v27
  %49 = vmatprep.subr.mxu0 0.0
  %50 = vmatpush1.msra.mxu0 %v28
  %51 = vmatprep.subr.mxu0 0.0
  %52 = vmatpush1.msra.mxu0 0.0
  %53 = vmatprep.subr.mxu0 0.0
  %54 = vmatpush1.msra.mxu0 0.0
  %55 = vmatprep.subr.mxu0 0.0
  %56 = vmatpush1.msra.mxu0 0.0
  %57 = vmatprep.subr.mxu0 0.0
  %58 = vmatpush1.msra.mxu0 0.0
  %59 = vmatprep.subr.mxu0 0.0
  %60 = vmatpush1.msra.mxu0 0.0
  %61 = vmatprep.subr.mxu0 0.0
  %62 = vmatpush1.msra.mxu0 0.0
  %63 = vmatprep.subr.mxu0 0.0
  %64 = vmatpush1.msra.mxu0 0.0
  %65 = vmatprep.subr.mxu0 0.0
  %66 = vmatpush1.msra.mxu0 0.0
  %67 = vmatprep.subr.mxu0 0.0
  %68 = vmatpush1.msra.mxu0 0.0
  %69 = vmatprep.subr.mxu0 0.0
  %70 = vmatpush1.msra.mxu0 0.0
  %71 = vmatprep.subr.mxu0 0.0
  %72 = vmatpush1.msra.mxu0 0.0
  %73 = vmatprep.subr.mxu0 0.0
  %74 = vmatpush1.msra.mxu0 0.0
  %75 = vmatprep.subr.mxu0 0.0
  %76 = vmatpush1.msra.mxu0 0.0
  %77 = vmatprep.subr.mxu0 0.0
  %78 = vmatpush1.msra.mxu0 0.0
  %79 = vmatprep.subr.mxu0 0.0
  %80 = vmatpush1.msra.mxu0 0.0
  %81 = vmatprep.subr.mxu0 0.0
  %82 = vmatpush1.msra.mxu0 0.0
  %83 = vmatprep.subr.mxu0 0.0
  %84 = vmatpush1.msra.mxu0 0.0
  %85 = vmatprep.subr.mxu0 0.0
  %86 = vmatpush1.msra.mxu0 0.0
  %87 = vmatprep.subr.mxu0 0.0
  %88 = vmatpush1.msra.mxu0 0.0
  %89 = vmatprep.subr.mxu0 0.0
  %90 = vmatpush1.msra.mxu0 0.0
  %91 = vmatprep.subr.mxu0 0.0
  %92 = vmatpush1.msra.mxu0 0.0
  %93 = vmatprep.subr.mxu0 0.0
  %94 = vmatpush1.msra.mxu0 0.0
  %95 = vmatprep.subr.mxu0 0.0
  %96 = vmatpush1.msra.mxu0 0.0
  %97 = vmatprep.subr.mxu0 0.0
  %98 = vmatpush1.msra.mxu0 0.0
  %99 = vmatprep.subr.mxu0 0.0
  %100 = vmatpush1.msra.mxu0 0.0
  %101 = vmatprep.subr.mxu0 0.0
  %102 = vmatpush1.msra.mxu0 0.0
  %103 = vmatprep.subr.mxu0 0.0
  %104 = vmatpush1.msra.mxu0 0.0
  %105 = vmatprep.subr.mxu0 0.0
  %106 = vmatpush1.msra.mxu0 0.0
  %107 = vmatprep.mubr.f32.mxu0 0.0
  %108 = vmatmul.mubr.f32.gmra.mrb[0].mxu0 %v38
  %v109 = vpop.f32.mrb[0].mxu0
  %v110 = vadd.f32 %v34, %v109
  %v111 = vpop.f32.mrb[0].mxu0
  %112 = vmatprep.mubr.f32.mxu0 0.0
  %113 = vmatmul.mubr.f32.gmra.mrb[0].mxu0 %v41
  %v114 = vpop.f32.mrb[0].mxu0
  %v115 = vadd.f32 %v34, %v114
  %v116 = vpop.f32.mrb[0].mxu0
  %117 = vdwg.mxu0
  %v118 = vld [vmem:[%s4] sm:$0xff]
  %v119 = vld [vmem:[%s4 + $0x8] sm:$0xff]
  %v120 = vld [vmem:[%s4 + $0x10] sm:$0xff]
  %v121 = vld [vmem:[%s4 + $0x18] sm:$0xff]
  %v123 = vrot.slane %v115, 6
  %vm125 = vcmask 523264
  %v126 = vsel %vm125, %v110, %v123
  %v128 = vsel %vm36, 0.0, 0
  %130 = vmatprep.subr.mxu0 0.0
  %131 = vmatpush1.msra.mxu0 %v118
  %132 = vmatprep.subr.mxu0 0.0
  %133 = vmatpush1.msra.mxu0 %v119
  %134 = vmatprep.subr.mxu0 0.0
  %135 = vmatpush1.msra.mxu0 %v120
  %136 = vmatprep.subr.mxu0 0.0
  %137 = vmatpush1.msra.mxu0 %v121
  %138 = vmatprep.subr.mxu0 0.0
  %139 = vmatpush1.msra.mxu0 0.0
  %140 = vmatprep.subr.mxu0 0.0
  %141 = vmatpush1.msra.mxu0 0.0
  %142 = vmatprep.subr.mxu0 0.0
  %143 = vmatpush1.msra.mxu0 0.0
  %144 = vmatprep.subr.mxu0 0.0
  %145 = vmatpush1.msra.mxu0 0.0
  %146 = vmatprep.subr.mxu0 0.0
  %147 = vmatpush1.msra.mxu0 0.0
  %148 = vmatprep.subr.mxu0 0.0
  %149 = vmatpush1.msra.mxu0 0.0
  %150 = vmatprep.subr.mxu0 0.0
  %151 = vmatpush1.msra.mxu0 0.0
  %152 = vmatprep.subr.mxu0 0.0
  %153 = vmatpush1.msra.mxu0 0.0
  %154 = vmatprep.subr.mxu0 0.0
  %155 = vmatpush1.msra.mxu0 0.0
  %156 = vmatprep.subr.mxu0 0.0
  %157 = vmatpush1.msra.mxu0 0.0
  %158 = vmatprep.subr.mxu0 0.0
  %159 = vmatpush1.msra.mxu0 0.0
  %160 = vmatprep.subr.mxu0 0.0
  %161 = vmatpush1.msra.mxu0 0.0
  %162 = vmatprep.subr.mxu0 0.0
  %163 = vmatpush1.msra.mxu0 0.0
  %164 = vmatprep.subr.mxu0 0.0
  %165 = vmatpush1.msra.mxu0 0.0
  %166 = vmatprep.subr.mxu0 0.0
  %167 = vmatpush1.msra.mxu0 0.0
  %168 = vmatprep.subr.mxu0 0.0
  %169 = vmatpush1.msra.mxu0 0.0
  %170 = vmatprep.subr.mxu0 0.0
  %171 = vmatpush1.msra.mxu0 0.0
  %172 = vmatprep.subr.mxu0 0.0
  %173 = vmatpush1.msra.mxu0 0.0
  %174 = vmatprep.subr.mxu0 0.0
  %175 = vmatpush1.msra.mxu0 0.0
  %176 = vmatprep.subr.mxu0 0.0
  %177 = vmatpush1.msra.mxu0 0.0
  %178 = vmatprep.subr.mxu0 0.0
  %179 = vmatpush1.msra.mxu0 0.0
  %180 = vmatprep.subr.mxu0 0.0
  %181 = vmatpush1.msra.mxu0 0.0
  %182 = vmatprep.subr.mxu0 0.0
  %183 = vmatpush1.msra.mxu0 0.0
  %184 = vmatprep.subr.mxu0 0.0
  %185 = vmatpush1.msra.mxu0 0.0
  %186 = vmatprep.subr.mxu0 0.0
  %187 = vmatpush1.msra.mxu0 0.0
  %188 = vmatprep.subr.mxu0 0.0
  %189 = vmatpush1.msra.mxu0 0.0
  %190 = vmatprep.subr.mxu0 0.0
  %191 = vmatpush1.msra.mxu0 0.0
  %192 = vmatprep.subr.mxu0 0.0
  %193 = vmatpush1.msra.mxu0 0.0
  %194 = vmatprep.mubr.f32.mxu0 0.0
  %195 = vmatmul.mubr.f32.gmra.mrb[0].mxu0 %v128
  %v196 = vpop.f32.mrb[0].mxu0
  %v197 = vadd.f32 0.0, %v196
  %v198 = vpop.f32.mrb[0].mxu0
  %199 = vdwg.mxu0
  %v200 = vadd.f32 %v126, %v197
  %v201 = vxor.u32 %v200, 2147483648
  %v202 = vmul.f32 %v201, 1.442695
  %v203 = vpow.pop %v202
  %v204 = vadd.f32 %v203, 1.0
  %v205 = vrcp.pop %v204
  %v206 = vmul.f32 1.0, %v205
  %208 = vrot.lane.b32.xlu0 %v206, 80
  %v209 = vpop.permute.xlu0 %208
  %vm211 = vcmask 130048
  %v212 = vsel %vm211, %v206, %v209
  %213 = vrot.lane.b32.xlu0 %v206, 112
  %v214 = vpop.permute.xlu0 %213
  %216 = vrot.lane.b32.xlu0 %v206, 64
  %v217 = vpop.permute.xlu0 %216
  %v219 = vsel %vm211, %v214, %v217
  %220 = vrot.lane.b32.xlu0 %v206, 32
  %v221 = vpop.permute.xlu0 %220
  %v223 = vsel %vm211, %v209, %v221
  %225 = vrot.lane.b32.xlu0 %v200, 96
  %v226 = vpop.permute.xlu0 %225
  %228 = vrot.lane.b32.xlu0 %v200, 48
  %v229 = vpop.permute.xlu0 %228
  %v231 = vsel %vm211, %v226, %v229
  %v232 = vtanh.pop %v231
  %v233 = vmul.f32 %v219, 0.0
  %v234 = vmul.f32 %v212, %v232
  %v235 = vadd.f32 %v233, %v234
  %v236 = vtanh.pop %v235
  %v237 = vmul.f32 %v223, %v236
  %v238 = vld [vmem:[%s1] sm:$0x3]
  %vm239 = vcmp.gt.f32.partialorder %v238, 0.0
  %s240 = scalar_lea.vmem %s1, 14
  %v241 = vld [vmem:[%s240] sm:$0x3]
  %vm242 = vcmp.gt.f32.partialorder %v241, 0.0
  %v243 = vsel %vm239, 1, 0
  %244 = vset.pattern.permute.xlu0 0
  %245 = vperm.xlu0 %244, %v243
  %v246 = vpop.permute.xlu0 %245
  %vm247 = vcmp.eq.s32.totalorder %v246, 1
  %v248 = vsel %vm247, %v237, 0.0
  %v249 = vsel %vm247, %v235, 0.0
  %v250 = vsel %vm242, 1, 0
  %251 = vset.pattern.permute.xlu0 0
  %252 = vperm.xlu0 %251, %v250
  %v253 = vpop.permute.xlu0 %252
  %vm254 = vcmp.eq.s32.totalorder %v253, 1
  %v255 = vsel %vm254, %v237, 0.0
  %v256 = vsel %vm254, %v235, 0.0
  %v257 = vrot.slane %v115, 2
  %v259 = vsel %vm125, %v110, %v257
  %v260 = vsel %vm211, %v248, %v255
  %v262 = vsel %vm36, %v260, 0
  %264 = vmatprep.subr.mxu0 0.0
  %265 = vmatpush1.msra.mxu0 %v118
  %266 = vmatprep.subr.mxu0 0.0
  %267 = vmatpush1.msra.mxu0 %v119
  %268 = vmatprep.subr.mxu0 0.0
  %269 = vmatpush1.msra.mxu0 %v120
  %270 = vmatprep.subr.mxu0 0.0
  %271 = vmatpush1.msra.mxu0 %v121
  %272 = vmatprep.subr.mxu0 0.0
  %273 = vmatpush1.msra.mxu0 0.0
  %274 = vmatprep.subr.mxu0 0.0
  %275 = vmatpush1.msra.mxu0 0.0
  %276 = vmatprep.subr.mxu0 0.0
  %277 = vmatpush1.msra.mxu0 0.0
  %278 = vmatprep.subr.mxu0 0.0
  %279 = vmatpush1.msra.mxu0 0.0
  %280 = vmatprep.subr.mxu0 0.0
  %281 = vmatpush1.msra.mxu0 0.0
  %282 = vmatprep.subr.mxu0 0.0
  %283 = vmatpush1.msra.mxu0 0.0
  %284 = vmatprep.subr.mxu0 0.0
  %285 = vmatpush1.msra.mxu0 0.0
  %286 = vmatprep.subr.mxu0 0.0
  %287 = vmatpush1.msra.mxu0 0.0
  %288 = vmatprep.subr.mxu0 0.0
  %289 = vmatpush1.msra.mxu0 0.0
  %290 = vmatprep.subr.mxu0 0.0
  %291 = vmatpush1.msra.mxu0 0.0
  %292 = vmatprep.subr.mxu0 0.0
  %293 = vmatpush1.msra.mxu0 0.0
  %294 = vmatprep.subr.mxu0 0.0
  %295 = vmatpush1.msra.mxu0 0.0
  %296 = vmatprep.subr.mxu0 0.0
  %297 = vmatpush1.msra.mxu0 0.0
  %298 = vmatprep.subr.mxu0 0.0
  %299 = vmatpush1.msra.mxu0 0.0
  %300 = vmatprep.subr.mxu0 0.0
  %301 = vmatpush1.msra.mxu0 0.0
  %302 = vmatprep.subr.mxu0 0.0
  %303 = vmatpush1.msra.mxu0 0.0
  %304 = vmatprep.subr.mxu0 0.0
  %305 = vmatpush1.msra.mxu0 0.0
  %306 = vmatprep.subr.mxu0 0.0
  %307 = vmatpush1.msra.mxu0 0.0
  %308 = vmatprep.subr.mxu0 0.0
  %309 = vmatpush1.msra.mxu0 0.0
  %310 = vmatprep.subr.mxu0 0.0
  %311 = vmatpush1.msra.mxu0 0.0
  %312 = vmatprep.subr.mxu0 0.0
  %313 = vmatpush1.msra.mxu0 0.0
  %314 = vmatprep.subr.mxu0 0.0
  %315 = vmatpush1.msra.mxu0 0.0
  %316 = vmatprep.subr.mxu0 0.0
  %317 = vmatpush1.msra.mxu0 0.0
  %318 = vmatprep.subr.mxu0 0.0
  %319 = vmatpush1.msra.mxu0 0.0
  %320 = vmatprep.subr.mxu0 0.0
  %321 = vmatpush1.msra.mxu0 0.0
  %322 = vmatprep.subr.mxu0 0.0
  %323 = vmatpush1.msra.mxu0 0.0
  %324 = vmatprep.subr.mxu0 0.0
  %325 = vmatpush1.msra.mxu0 0.0
  %326 = vmatprep.subr.mxu0 0.0
  %327 = vmatpush1.msra.mxu0 0.0
  %328 = vmatprep.mubr.f32.mxu0 0.0
  %329 = vmatmul.mubr.f32.gmra.mrb[0].mxu0 %v262
  %v330 = vpop.f32.mrb[0].mxu0
  %v331 = vadd.f32 0.0, %v330
  %v332 = vpop.f32.mrb[0].mxu0
  %333 = vdwg.mxu0
  %v335 = vrot.slane %v331, 6
  %v337 = vadd.f32 %v259, %v335
  %v338 = vxor.u32 %v337, 2147483648
  %v339 = vmul.f32 %v338, 1.442695
  %v340 = vpow.pop %v339
  %v341 = vadd.f32 %v340, 1.0
  %v342 = vrcp.pop %v341
  %v343 = vmul.f32 1.0, %v342
  %345 = vrot.lane.b32.xlu0 %v343, 80
  %v346 = vpop.permute.xlu0 %345
  %v348 = vsel %vm211, %v343, %v346
  %349 = vrot.lane.b32.xlu0 %v343, 112
  %v350 = vpop.permute.xlu0 %349
  %352 = vrot.lane.b32.xlu0 %v343, 64
  %v353 = vpop.permute.xlu0 %352
  %v355 = vsel %vm211, %v350, %v353
  %356 = vrot.lane.b32.xlu0 %v343, 32
  %v357 = vpop.permute.xlu0 %356
  %v359 = vsel %vm211, %v346, %v357
  %361 = vrot.lane.b32.xlu0 %v337, 96
  %v362 = vpop.permute.xlu0 %361
  %364 = vrot.lane.b32.xlu0 %v337, 48
  %v365 = vpop.permute.xlu0 %364
  %v367 = vsel %vm211, %v362, %v365
  %v368 = vtanh.pop %v367
  %v369 = vsel %vm211, %v249, %v256
  %v371 = vrot.slane %v369, 6
  %v373 = vmul.f32 %v355, %v371
  %v374 = vmul.f32 %v348, %v368
  %v375 = vadd.f32 %v373, %v374
  %v376 = vtanh.pop %v375
  %v377 = vmul.f32 %v359, %v376
  %s378 = scalar_lea.vmem %s1, 2
  %v379 = vld [vmem:[%s378] sm:$0x3]
  %vm380 = vcmp.gt.f32.partialorder %v379, 0.0
  %s381 = scalar_lea.vmem %s1, 12
  %v382 = vld [vmem:[%s381] sm:$0x3]
  %vm383 = vcmp.gt.f32.partialorder %v382, 0.0
  %v384 = vsel %vm380, 1, 0
  %385 = vset.pattern.permute.xlu0 0
  %386 = vperm.xlu0 %385, %v384
  %v387 = vpop.permute.xlu0 %386
  %vm388 = vcmp.eq.s32.totalorder %v387, 1
  %v390 = vrot.slane %v377, 2
  %v392 = vsel %vm388, %v390, %v248
  %v394 = vrot.slane %v375, 2
  %v396 = vsel %vm388, %v394, %v249
  %v397 = vsel %vm383, 1, 0
  %398 = vset.pattern.permute.xlu0 0
  %399 = vperm.xlu0 %398, %v397
  %v400 = vpop.permute.xlu0 %399
  %vm401 = vcmp.eq.s32.totalorder %v400, 1
  %402 = vrot.lane.b32.xlu0 %v390, 112
  %v403 = vpop.permute.xlu0 %402
  %406 = vrot.lane.b32.xlu0 %v255, 112
  %v407 = vpop.permute.xlu0 %406
  %v409 = vsel %vm401, %v403, %v407
  %410 = vrot.lane.b32.xlu0 %v394, 112
  %v411 = vpop.permute.xlu0 %410
  %414 = vrot.lane.b32.xlu0 %v256, 112
  %v415 = vpop.permute.xlu0 %414
  %v417 = vsel %vm401, %v411, %v415
  %v418 = vsel %vm388, %v390, 0.0
  %v419 = vsel %vm401, %v403, 0.0
  %421 = vrot.lane.b32.xlu0 %v409, 16
  %v422 = vpop.permute.xlu0 %421
  %v424 = vsel %vm211, %v392, %v422
  %v426 = vsel %vm36, %v424, 0
  %428 = vmatprep.subr.mxu0 0.0
  %429 = vmatpush1.msra.mxu0 %v118
  %430 = vmatprep.subr.mxu0 0.0
  %431 = vmatpush1.msra.mxu0 %v119
  %432 = vmatprep.subr.mxu0 0.0
  %433 = vmatpush1.msra.mxu0 %v120
  %434 = vmatprep.subr.mxu0 0.0
  %435 = vmatpush1.msra.mxu0 %v121
  %436 = vmatprep.subr.mxu0 0.0
  %437 = vmatpush1.msra.mxu0 0.0
  %438 = vmatprep.subr.mxu0 0.0
  %439 = vmatpush1.msra.mxu0 0.0
  %440 = vmatprep.subr.mxu0 0.0
  %441 = vmatpush1.msra.mxu0 0.0
  %442 = vmatprep.subr.mxu0 0.0
  %443 = vmatpush1.msra.mxu0 0.0
  %444 = vmatprep.subr.mxu0 0.0
  %445 = vmatpush1.msra.mxu0 0.0
  %446 = vmatprep.subr.mxu0 0.0
  %447 = vmatpush1.msra.mxu0 0.0
  %448 = vmatprep.subr.mxu0 0.0
  %449 = vmatpush1.msra.mxu0 0.0
  %450 = vmatprep.subr.mxu0 0.0
  %451 = vmatpush1.msra.mxu0 0.0
  %452 = vmatprep.subr.mxu0 0.0
  %453 = vmatpush1.msra.mxu0 0.0
  %454 = vmatprep.subr.mxu0 0.0
  %455 = vmatpush1.msra.mxu0 0.0
  %456 = vmatprep.subr.mxu0 0.0
  %457 = vmatpush1.msra.mxu0 0.0
  %458 = vmatprep.subr.mxu0 0.0
  %459 = vmatpush1.msra.mxu0 0.0
  %460 = vmatprep.subr.mxu0 0.0
  %461 = vmatpush1.msra.mxu0 0.0
  %462 = vmatprep.subr.mxu0 0.0
  %463 = vmatpush1.msra.mxu0 0.0
  %464 = vmatprep.subr.mxu0 0.0
  %465 = vmatpush1.msra.mxu0 0.0
  %466 = vmatprep.subr.mxu0 0.0
  %467 = vmatpush1.msra.mxu0 0.0
  %468 = vmatprep.subr.mxu0 0.0
  %469 = vmatpush1.msra.mxu0 0.0
  %470 = vmatprep.subr.mxu0 0.0
  %471 = vmatpush1.msra.mxu0 0.0
  %472 = vmatprep.subr.mxu0 0.0
  %473 = vmatpush1.msra.mxu0 0.0
  %474 = vmatprep.subr.mxu0 0.0
  %475 = vmatpush1.msra.mxu0 0.0
  %476 = vmatprep.subr.mxu0 0.0
  %477 = vmatpush1.msra.mxu0 0.0
  %478 = vmatprep.subr.mxu0 0.0
  %479 = vmatpush1.msra.mxu0 0.0
  %480 = vmatprep.subr.mxu0 0.0
  %481 = vmatpush1.msra.mxu0 0.0
  %482 = vmatprep.subr.mxu0 0.0
  %483 = vmatpush1.msra.mxu0 0.0
  %484 = vmatprep.subr.mxu0 0.0
  %485 = vmatpush1.msra.mxu0 0.0
  %486 = vmatprep.subr.mxu0 0.0
  %487 = vmatpush1.msra.mxu0 0.0
  %488 = vmatprep.subr.mxu0 0.0
  %489 = vmatpush1.msra.mxu0 0.0
  %490 = vmatprep.subr.mxu0 0.0
  %491 = vmatpush1.msra.mxu0 0.0
  %492 = vmatprep.mubr.f32.mxu0 0.0
  %493 = vmatmul.mubr.f32.gmra.mrb[0].mxu0 %v426
  %v494 = vpop.f32.mrb[0].mxu0
  %v495 = vadd.f32 0.0, %v494
  %v496 = vpop.f32.mrb[0].mxu0
  %497 = vdwg.mxu0
  %v499 = vrot.slane %v495, 4
  %v501 = vadd.f32 %v126, %v499
  %v502 = vxor.u32 %v501, 2147483648
  %v503 = vmul.f32 %v502, 1.442695
  %v504 = vpow.pop %v503
  %v505 = vadd.f32 %v504, 1.0
  %v506 = vrcp.pop %v505
  %v507 = vmul.f32 1.0, %v506
  %509 = vrot.lane.b32.xlu0 %v507, 80
  %v510 = vpop.permute.xlu0 %509
  %v512 = vsel %vm211, %v507, %v510
  %513 = vrot.lane.b32.xlu0 %v507, 112
  %v514 = vpop.permute.xlu0 %513
  %516 = vrot.lane.b32.xlu0 %v507, 64
  %v517 = vpop.permute.xlu0 %516
  %v519 = vsel %vm211, %v514, %v517
  %520 = vrot.lane.b32.xlu0 %v507, 32
  %v521 = vpop.permute.xlu0 %520
  %v523 = vsel %vm211, %v510, %v521
  %525 = vrot.lane.b32.xlu0 %v501, 96
  %v526 = vpop.permute.xlu0 %525
  %528 = vrot.lane.b32.xlu0 %v501, 48
  %v529 = vpop.permute.xlu0 %528
  %v531 = vsel %vm211, %v526, %v529
  %v532 = vtanh.pop %v531
  %534 = vrot.lane.b32.xlu0 %v417, 16
  %v535 = vpop.permute.xlu0 %534
  %v537 = vsel %vm211, %v396, %v535
  %v539 = vrot.slane %v537, 4
  %v541 = vmul.f32 %v519, %v539
  %v542 = vmul.f32 %v512, %v532
  %v543 = vadd.f32 %v541, %v542
  %v544 = vtanh.pop %v543
  %v545 = vmul.f32 %v523, %v544
  %s546 = scalar_lea.vmem %s1, 4
  %v547 = vld [vmem:[%s546] sm:$0x3]
  %vm548 = vcmp.gt.f32.partialorder %v547, 0.0
  %s549 = scalar_lea.vmem %s1, 10
  %v550 = vld [vmem:[%s549] sm:$0x3]
  %vm551 = vcmp.gt.f32.partialorder %v550, 0.0
  %v552 = vsel %vm548, 1, 0
  %553 = vset.pattern.permute.xlu0 0
  %554 = vperm.xlu0 %553, %v552
  %v555 = vpop.permute.xlu0 %554
  %vm556 = vcmp.eq.s32.totalorder %v555, 1
  %v558 = vrot.slane %v545, 4
  %v560 = vsel %vm556, %v558, %v392
  %v562 = vrot.slane %v543, 4
  %v564 = vsel %vm556, %v562, %v396
  %v565 = vsel %vm551, 1, 0
  %566 = vset.pattern.permute.xlu0 0
  %567 = vperm.xlu0 %566, %v565
  %v568 = vpop.permute.xlu0 %567
  %vm569 = vcmp.eq.s32.totalorder %v568, 1
  %570 = vrot.lane.b32.xlu0 %v558, 112
  %v571 = vpop.permute.xlu0 %570
  %v573 = vsel %vm569, %v571, %v409
  %574 = vrot.lane.b32.xlu0 %v562, 112
  %v575 = vpop.permute.xlu0 %574
  %v577 = vsel %vm569, %v575, %v417
  %v578 = vsel %vm556, %v558, 0.0
  %v579 = vsel %vm569, %v571, 0.0
  %581 = vrot.lane.b32.xlu0 %v573, 16
  %v582 = vpop.permute.xlu0 %581
  %v584 = vsel %vm211, %v560, %v582
  %v586 = vsel %vm36, %v584, 0
  %588 = vmatprep.subr.mxu0 0.0
  %589 = vmatpush1.msra.mxu0 %v118
  %590 = vmatprep.subr.mxu0 0.0
  %591 = vmatpush1.msra.mxu0 %v119
  %592 = vmatprep.subr.mxu0 0.0
  %593 = vmatpush1.msra.mxu0 %v120
  %594 = vmatprep.subr.mxu0 0.0
  %595 = vmatpush1.msra.mxu0 %v121
  %596 = vmatprep.subr.mxu0 0.0
  %597 = vmatpush1.msra.mxu0 0.0
  %598 = vmatprep.subr.mxu0 0.0
  %599 = vmatpush1.msra.mxu0 0.0
  %600 = vmatprep.subr.mxu0 0.0
  %601 = vmatpush1.msra.mxu0 0.0
  %602 = vmatprep.subr.mxu0 0.0
  %603 = vmatpush1.msra.mxu0 0.0
  %604 = vmatprep.subr.mxu0 0.0
  %605 = vmatpush1.msra.mxu0 0.0
  %606 = vmatprep.subr.mxu0 0.0
  %607 = vmatpush1.msra.mxu0 0.0
  %608 = vmatprep.subr.mxu0 0.0
  %609 = vmatpush1.msra.mxu0 0.0
  %610 = vmatprep.subr.mxu0 0.0
  %611 = vmatpush1.msra.mxu0 0.0
  %612 = vmatprep.subr.mxu0 0.0
  %613 = vmatpush1.msra.mxu0 0.0
  %614 = vmatprep.subr.mxu0 0.0
  %615 = vmatpush1.msra.mxu0 0.0
  %616 = vmatprep.subr.mxu0 0.0
  %617 = vmatpush1.msra.mxu0 0.0
  %618 = vmatprep.subr.mxu0 0.0
  %619 = vmatpush1.msra.mxu0 0.0
  %620 = vmatprep.subr.mxu0 0.0
  %621 = vmatpush1.msra.mxu0 0.0
  %622 = vmatprep.subr.mxu0 0.0
  %623 = vmatpush1.msra.mxu0 0.0
  %624 = vmatprep.subr.mxu0 0.0
  %625 = vmatpush1.msra.mxu0 0.0
  %626 = vmatprep.subr.mxu0 0.0
  %627 = vmatpush1.msra.mxu0 0.0
  %628 = vmatprep.subr.mxu0 0.0
  %629 = vmatpush1.msra.mxu0 0.0
  %630 = vmatprep.subr.mxu0 0.0
  %631 = vmatpush1.msra.mxu0 0.0
  %632 = vmatprep.subr.mxu0 0.0
  %633 = vmatpush1.msra.mxu0 0.0
  %634 = vmatprep.subr.mxu0 0.0
  %635 = vmatpush1.msra.mxu0 0.0
  %636 = vmatprep.subr.mxu0 0.0
  %637 = vmatpush1.msra.mxu0 0.0
  %638 = vmatprep.subr.mxu0 0.0
  %639 = vmatpush1.msra.mxu0 0.0
  %640 = vmatprep.subr.mxu0 0.0
  %641 = vmatpush1.msra.mxu0 0.0
  %642 = vmatprep.subr.mxu0 0.0
  %643 = vmatpush1.msra.mxu0 0.0
  %644 = vmatprep.subr.mxu0 0.0
  %645 = vmatpush1.msra.mxu0 0.0
  %646 = vmatprep.subr.mxu0 0.0
  %647 = vmatpush1.msra.mxu0 0.0
  %648 = vmatprep.subr.mxu0 0.0
  %649 = vmatpush1.msra.mxu0 0.0
  %650 = vmatprep.subr.mxu0 0.0
  %651 = vmatpush1.msra.mxu0 0.0
  %652 = vmatprep.mubr.f32.mxu0 0.0
  %653 = vmatmul.mubr.f32.gmra.mrb[0].mxu0 %v586
  %v654 = vpop.f32.mrb[0].mxu0
  %v655 = vadd.f32 0.0, %v654
  %v656 = vpop.f32.mrb[0].mxu0
  %657 = vdwg.mxu0
  %v659 = vrot.slane %v655, 2
  %v661 = vadd.f32 %v259, %v659
  %v662 = vxor.u32 %v661, 2147483648
  %v663 = vmul.f32 %v662, 1.442695
  %v664 = vpow.pop %v663
  %v665 = vadd.f32 %v664, 1.0
  %v666 = vrcp.pop %v665
  %v667 = vmul.f32 1.0, %v666
  %669 = vrot.lane.b32.xlu0 %v667, 80
  %v670 = vpop.permute.xlu0 %669
  %v672 = vsel %vm211, %v667, %v670
  %673 = vrot.lane.b32.xlu0 %v667, 112
  %v674 = vpop.permute.xlu0 %673
  %676 = vrot.lane.b32.xlu0 %v667, 64
  %v677 = vpop.permute.xlu0 %676
  %v679 = vsel %vm211, %v674, %v677
  %680 = vrot.lane.b32.xlu0 %v667, 32
  %v681 = vpop.permute.xlu0 %680
  %v683 = vsel %vm211, %v670, %v681
  %685 = vrot.lane.b32.xlu0 %v661, 96
  %v686 = vpop.permute.xlu0 %685
  %688 = vrot.lane.b32.xlu0 %v661, 48
  %v689 = vpop.permute.xlu0 %688
  %v691 = vsel %vm211, %v686, %v689
  %v692 = vtanh.pop %v691
  %694 = vrot.lane.b32.xlu0 %v577, 16
  %v695 = vpop.permute.xlu0 %694
  %v697 = vsel %vm211, %v564, %v695
  %v699 = vrot.slane %v697, 2
  %v701 = vmul.f32 %v679, %v699
  %v702 = vmul.f32 %v672, %v692
  %v703 = vadd.f32 %v701, %v702
  %v704 = vtanh.pop %v703
  %v705 = vmul.f32 %v683, %v704
  %s706 = scalar_lea.vmem %s1, 6
  %v707 = vld [vmem:[%s706] sm:$0x3]
  %vm708 = vcmp.gt.f32.partialorder %v707, 0.0
  %s709 = scalar_lea.vmem %s1, 8
  %v710 = vld [vmem:[%s709] sm:$0x3]
  %vm711 = vcmp.gt.f32.partialorder %v710, 0.0
  %v712 = vsel %vm708, 1, 0
  %713 = vset.pattern.permute.xlu0 0
  %714 = vperm.xlu0 %713, %v712
  %v715 = vpop.permute.xlu0 %714
  %vm716 = vcmp.eq.s32.totalorder %v715, 1
  %v718 = vrot.slane %v705, 6
  %v720 = vsel %vm716, %v718, %v560
  %v722 = vrot.slane %v703, 6
  %v724 = vsel %vm716, %v722, %v564
  %v725 = vsel %vm711, 1, 0
  %726 = vset.pattern.permute.xlu0 0
  %727 = vperm.xlu0 %726, %v725
  %v728 = vpop.permute.xlu0 %727
  %vm729 = vcmp.eq.s32.totalorder %v728, 1
  %730 = vrot.lane.b32.xlu0 %v718, 112
  %v731 = vpop.permute.xlu0 %730
  %v733 = vsel %vm729, %v731, %v573
  %734 = vrot.lane.b32.xlu0 %v722, 112
  %v735 = vpop.permute.xlu0 %734
  %v737 = vsel %vm729, %v735, %v577
  %v738 = vsel %vm716, %v718, 0.0
  %v739 = vsel %vm729, %v731, 0.0
  %v741 = vrot.slane %v110, 6
  %v743 = vsel %vm125, %v115, %v741
  %745 = vrot.lane.b32.xlu0 %v733, 16
  %v746 = vpop.permute.xlu0 %745
  %v748 = vsel %vm211, %v720, %v746
  %v750 = vsel %vm36, %v748, 0
  %752 = vmatprep.subr.mxu0 0.0
  %753 = vmatpush1.msra.mxu0 %v118
  %754 = vmatprep.subr.mxu0 0.0
  %755 = vmatpush1.msra.mxu0 %v119
  %756 = vmatprep.subr.mxu0 0.0
  %757 = vmatpush1.msra.mxu0 %v120
  %758 = vmatprep.subr.mxu0 0.0
  %759 = vmatpush1.msra.mxu0 %v121
  %760 = vmatprep.subr.mxu0 0.0
  %761 = vmatpush1.msra.mxu0 0.0
  %762 = vmatprep.subr.mxu0 0.0
  %763 = vmatpush1.msra.mxu0 0.0
  %764 = vmatprep.subr.mxu0 0.0
  %765 = vmatpush1.msra.mxu0 0.0
  %766 = vmatprep.subr.mxu0 0.0
  %767 = vmatpush1.msra.mxu0 0.0
  %768 = vmatprep.subr.mxu0 0.0
  %769 = vmatpush1.msra.mxu0 0.0
  %770 = vmatprep.subr.mxu0 0.0
  %771 = vmatpush1.msra.mxu0 0.0
  %772 = vmatprep.subr.mxu0 0.0
  %773 = vmatpush1.msra.mxu0 0.0
  %774 = vmatprep.subr.mxu0 0.0
  %775 = vmatpush1.msra.mxu0 0.0
  %776 = vmatprep.subr.mxu0 0.0
  %777 = vmatpush1.msra.mxu0 0.0
  %778 = vmatprep.subr.mxu0 0.0
  %779 = vmatpush1.msra.mxu0 0.0
  %780 = vmatprep.subr.mxu0 0.0
  %781 = vmatpush1.msra.mxu0 0.0
  %782 = vmatprep.subr.mxu0 0.0
  %783 = vmatpush1.msra.mxu0 0.0
  %784 = vmatprep.subr.mxu0 0.0
  %785 = vmatpush1.msra.mxu0 0.0
  %786 = vmatprep.subr.mxu0 0.0
  %787 = vmatpush1.msra.mxu0 0.0
  %788 = vmatprep.subr.mxu0 0.0
  %789 = vmatpush1.msra.mxu0 0.0
  %790 = vmatprep.subr.mxu0 0.0
  %791 = vmatpush1.msra.mxu0 0.0
  %792 = vmatprep.subr.mxu0 0.0
  %793 = vmatpush1.msra.mxu0 0.0
  %794 = vmatprep.subr.mxu0 0.0
  %795 = vmatpush1.msra.mxu0 0.0
  %796 = vmatprep.subr.mxu0 0.0
  %797 = vmatpush1.msra.mxu0 0.0
  %798 = vmatprep.subr.mxu0 0.0
  %799 = vmatpush1.msra.mxu0 0.0
  %800 = vmatprep.subr.mxu0 0.0
  %801 = vmatpush1.msra.mxu0 0.0
  %802 = vmatprep.subr.mxu0 0.0
  %803 = vmatpush1.msra.mxu0 0.0
  %804 = vmatprep.subr.mxu0 0.0
  %805 = vmatpush1.msra.mxu0 0.0
  %806 = vmatprep.subr.mxu0 0.0
  %807 = vmatpush1.msra.mxu0 0.0
  %808 = vmatprep.subr.mxu0 0.0
  %809 = vmatpush1.msra.mxu0 0.0
  %810 = vmatprep.subr.mxu0 0.0
  %811 = vmatpush1.msra.mxu0 0.0
  %812 = vmatprep.subr.mxu0 0.0
  %813 = vmatpush1.msra.mxu0 0.0
  %814 = vmatprep.subr.mxu0 0.0
  %815 = vmatpush1.msra.mxu0 0.0
  %816 = vmatprep.mubr.f32.mxu0 0.0
  %817 = vmatmul.mubr.f32.gmra.mrb[0].mxu0 %v750
  %v818 = vpop.f32.mrb[0].mxu0
  %v819 = vadd.f32 0.0, %v818
  %v820 = vpop.f32.mrb[0].mxu0
  %821 = vdwg.mxu0
  %v822 = vadd.f32 %v743, %v819
  %v823 = vxor.u32 %v822, 2147483648
  %v824 = vmul.f32 %v823, 1.442695
  %v825 = vpow.pop %v824
  %v826 = vadd.f32 %v825, 1.0
  %v827 = vrcp.pop %v826
  %v828 = vmul.f32 1.0, %v827
  %830 = vrot.lane.b32.xlu0 %v828, 80
  %v831 = vpop.permute.xlu0 %830
  %v833 = vsel %vm211, %v828, %v831
  %834 = vrot.lane.b32.xlu0 %v828, 112
  %v835 = vpop.permute.xlu0 %834
  %837 = vrot.lane.b32.xlu0 %v828, 64
  %v838 = vpop.permute.xlu0 %837
  %v840 = vsel %vm211, %v835, %v838
  %841 = vrot.lane.b32.xlu0 %v828, 32
  %v842 = vpop.permute.xlu0 %841
  %v844 = vsel %vm211, %v831, %v842
  %846 = vrot.lane.b32.xlu0 %v822, 96
  %v847 = vpop.permute.xlu0 %846
  %849 = vrot.lane.b32.xlu0 %v822, 48
  %v850 = vpop.permute.xlu0 %849
  %v852 = vsel %vm211, %v847, %v850
  %v853 = vtanh.pop %v852
  %855 = vrot.lane.b32.xlu0 %v737, 16
  %v856 = vpop.permute.xlu0 %855
  %v858 = vsel %vm211, %v724, %v856
  %v859 = vmul.f32 %v840, %v858
  %v860 = vmul.f32 %v833, %v853
  %v861 = vadd.f32 %v859, %v860
  %v862 = vtanh.pop %v861
  %v863 = vmul.f32 %v844, %v862
  %v864 = vsel %vm729, %v863, %v720
  %v865 = vsel %vm729, %v861, %v724
  %v866 = vsel %vm716, %v863, %v746
  %v867 = vsel %vm716, %v861, %v856
  %v868 = vsel %vm729, %v863, 0.0
  %v869 = vsel %vm716, %v863, 0.0
  %v870 = vrot.slane %v110, 2
  %v872 = vsel %vm125, %v115, %v870
  %v873 = vsel %vm211, %v864, %v866
  %v875 = vsel %vm36, %v873, 0
  %877 = vmatprep.subr.mxu0 0.0
  %878 = vmatpush1.msra.mxu0 %v118
  %879 = vmatprep.subr.mxu0 0.0
  %880 = vmatpush1.msra.mxu0 %v119
  %881 = vmatprep.subr.mxu0 0.0
  %882 = vmatpush1.msra.mxu0 %v120
  %883 = vmatprep.subr.mxu0 0.0
  %884 = vmatpush1.msra.mxu0 %v121
  %885 = vmatprep.subr.mxu0 0.0
  %886 = vmatpush1.msra.mxu0 0.0
  %887 = vmatprep.subr.mxu0 0.0
  %888 = vmatpush1.msra.mxu0 0.0
  %889 = vmatprep.subr.mxu0 0.0
  %890 = vmatpush1.msra.mxu0 0.0
  %891 = vmatprep.subr.mxu0 0.0
  %892 = vmatpush1.msra.mxu0 0.0
  %893 = vmatprep.subr.mxu0 0.0
  %894 = vmatpush1.msra.mxu0 0.0
  %895 = vmatprep.subr.mxu0 0.0
  %896 = vmatpush1.msra.mxu0 0.0
  %897 = vmatprep.subr.mxu0 0.0
  %898 = vmatpush1.msra.mxu0 0.0
  %899 = vmatprep.subr.mxu0 0.0
  %900 = vmatpush1.msra.mxu0 0.0
  %901 = vmatprep.subr.mxu0 0.0
  %902 = vmatpush1.msra.mxu0 0.0
  %903 = vmatprep.subr.mxu0 0.0
  %904 = vmatpush1.msra.mxu0 0.0
  %905 = vmatprep.subr.mxu0 0.0
  %906 = vmatpush1.msra.mxu0 0.0
  %907 = vmatprep.subr.mxu0 0.0
  %908 = vmatpush1.msra.mxu0 0.0
  %909 = vmatprep.subr.mxu0 0.0
  %910 = vmatpush1.msra.mxu0 0.0
  %911 = vmatprep.subr.mxu0 0.0
  %912 = vmatpush1.msra.mxu0 0.0
  %913 = vmatprep.subr.mxu0 0.0
  %914 = vmatpush1.msra.mxu0 0.0
  %915 = vmatprep.subr.mxu0 0.0
  %916 = vmatpush1.msra.mxu0 0.0
  %917 = vmatprep.subr.mxu0 0.0
  %918 = vmatpush1.msra.mxu0 0.0
  %919 = vmatprep.subr.mxu0 0.0
  %920 = vmatpush1.msra.mxu0 0.0
  %921 = vmatprep.subr.mxu0 0.0
  %922 = vmatpush1.msra.mxu0 0.0
  %923 = vmatprep.subr.mxu0 0.0
  %924 = vmatpush1.msra.mxu0 0.0
  %925 = vmatprep.subr.mxu0 0.0
  %926 = vmatpush1.msra.mxu0 0.0
  %927 = vmatprep.subr.mxu0 0.0
  %928 = vmatpush1.msra.mxu0 0.0
  %929 = vmatprep.subr.mxu0 0.0
  %930 = vmatpush1.msra.mxu0 0.0
  %931 = vmatprep.subr.mxu0 0.0
  %932 = vmatpush1.msra.mxu0 0.0
  %933 = vmatprep.subr.mxu0 0.0
  %934 = vmatpush1.msra.mxu0 0.0
  %935 = vmatprep.subr.mxu0 0.0
  %936 = vmatpush1.msra.mxu0 0.0
  %937 = vmatprep.subr.mxu0 0.0
  %938 = vmatpush1.msra.mxu0 0.0
  %939 = vmatprep.subr.mxu0 0.0
  %940 = vmatpush1.msra.mxu0 0.0
  %941 = vmatprep.mubr.f32.mxu0 0.0
  %942 = vmatmul.mubr.f32.gmra.mrb[0].mxu0 %v875
  %v943 = vpop.f32.mrb[0].mxu0
  %v944 = vadd.f32 0.0, %v943
  %v945 = vpop.f32.mrb[0].mxu0
  %946 = vdwg.mxu0
  %v948 = vrot.slane %v944, 6
  %v950 = vadd.f32 %v872, %v948
  %v951 = vxor.u32 %v950, 2147483648
  %v952 = vmul.f32 %v951, 1.442695
  %v953 = vpow.pop %v952
  %v954 = vadd.f32 %v953, 1.0
  %v955 = vrcp.pop %v954
  %v956 = vmul.f32 1.0, %v955
  %958 = vrot.lane.b32.xlu0 %v956, 80
  %v959 = vpop.permute.xlu0 %958
  %v961 = vsel %vm211, %v956, %v959
  %962 = vrot.lane.b32.xlu0 %v956, 112
  %v963 = vpop.permute.xlu0 %962
  %965 = vrot.lane.b32.xlu0 %v956, 64
  %v966 = vpop.permute.xlu0 %965
  %v968 = vsel %vm211, %v963, %v966
  %969 = vrot.lane.b32.xlu0 %v956, 32
  %v970 = vpop.permute.xlu0 %969
  %v972 = vsel %vm211, %v959, %v970
  %974 = vrot.lane.b32.xlu0 %v950, 96
  %v975 = vpop.permute.xlu0 %974
  %977 = vrot.lane.b32.xlu0 %v950, 48
  %v978 = vpop.permute.xlu0 %977
  %v980 = vsel %vm211, %v975, %v978
  %v981 = vtanh.pop %v980
  %v982 = vsel %vm211, %v865, %v867
  %v984 = vrot.slane %v982, 6
  %v986 = vmul.f32 %v968, %v984
  %v987 = vmul.f32 %v961, %v981
  %v988 = vadd.f32 %v986, %v987
  %v989 = vtanh.pop %v988
  %v990 = vmul.f32 %v972, %v989
  %v992 = vrot.slane %v990, 2
  %v994 = vsel %vm569, %v992, %v864
  %v996 = vrot.slane %v988, 2
  %v998 = vsel %vm569, %v996, %v865
  %999 = vrot.lane.b32.xlu0 %v992, 112
  %v1000 = vpop.permute.xlu0 %999
  %1003 = vrot.lane.b32.xlu0 %v866, 112
  %v1004 = vpop.permute.xlu0 %1003
  %v1006 = vsel %vm556, %v1000, %v1004
  %1007 = vrot.lane.b32.xlu0 %v996, 112
  %v1008 = vpop.permute.xlu0 %1007
  %1011 = vrot.lane.b32.xlu0 %v867, 112
  %v1012 = vpop.permute.xlu0 %1011
  %v1014 = vsel %vm556, %v1008, %v1012
  %v1015 = vsel %vm569, %v992, 0.0
  %v1016 = vsel %vm556, %v1000, 0.0
  %1018 = vrot.lane.b32.xlu0 %v1006, 16
  %v1019 = vpop.permute.xlu0 %1018
  %v1021 = vsel %vm211, %v994, %v1019
  %v1023 = vsel %vm36, %v1021, 0
  %1025 = vmatprep.subr.mxu0 0.0
  %1026 = vmatpush1.msra.mxu0 %v118
  %1027 = vmatprep.subr.mxu0 0.0
  %1028 = vmatpush1.msra.mxu0 %v119
  %1029 = vmatprep.subr.mxu0 0.0
  %1030 = vmatpush1.msra.mxu0 %v120
  %1031 = vmatprep.subr.mxu0 0.0
  %1032 = vmatpush1.msra.mxu0 %v121
  %1033 = vmatprep.subr.mxu0 0.0
  %1034 = vmatpush1.msra.mxu0 0.0
  %1035 = vmatprep.subr.mxu0 0.0
  %1036 = vmatpush1.msra.mxu0 0.0
  %1037 = vmatprep.subr.mxu0 0.0
  %1038 = vmatpush1.msra.mxu0 0.0
  %1039 = vmatprep.subr.mxu0 0.0
  %1040 = vmatpush1.msra.mxu0 0.0
  %1041 = vmatprep.subr.mxu0 0.0
  %1042 = vmatpush1.msra.mxu0 0.0
  %1043 = vmatprep.subr.mxu0 0.0
  %1044 = vmatpush1.msra.mxu0 0.0
  %1045 = vmatprep.subr.mxu0 0.0
  %1046 = vmatpush1.msra.mxu0 0.0
  %1047 = vmatprep.subr.mxu0 0.0
  %1048 = vmatpush1.msra.mxu0 0.0
  %1049 = vmatprep.subr.mxu0 0.0
  %1050 = vmatpush1.msra.mxu0 0.0
  %1051 = vmatprep.subr.mxu0 0.0
  %1052 = vmatpush1.msra.mxu0 0.0
  %1053 = vmatprep.subr.mxu0 0.0
  %1054 = vmatpush1.msra.mxu0 0.0
  %1055 = vmatprep.subr.mxu0 0.0
  %1056 = vmatpush1.msra.mxu0 0.0
  %1057 = vmatprep.subr.mxu0 0.0
  %1058 = vmatpush1.msra.mxu0 0.0
  %1059 = vmatprep.subr.mxu0 0.0
  %1060 = vmatpush1.msra.mxu0 0.0
  %1061 = vmatprep.subr.mxu0 0.0
  %1062 = vmatpush1.msra.mxu0 0.0
  %1063 = vmatprep.subr.mxu0 0.0
  %1064 = vmatpush1.msra.mxu0 0.0
  %1065 = vmatprep.subr.mxu0 0.0
  %1066 = vmatpush1.msra.mxu0 0.0
  %1067 = vmatprep.subr.mxu0 0.0
  %1068 = vmatpush1.msra.mxu0 0.0
  %1069 = vmatprep.subr.mxu0 0.0
  %1070 = vmatpush1.msra.mxu0 0.0
  %1071 = vmatprep.subr.mxu0 0.0
  %1072 = vmatpush1.msra.mxu0 0.0
  %1073 = vmatprep.subr.mxu0 0.0
  %1074 = vmatpush1.msra.mxu0 0.0
  %1075 = vmatprep.subr.mxu0 0.0
  %1076 = vmatpush1.msra.mxu0 0.0
  %1077 = vmatprep.subr.mxu0 0.0
  %1078 = vmatpush1.msra.mxu0 0.0
  %1079 = vmatprep.subr.mxu0 0.0
  %1080 = vmatpush1.msra.mxu0 0.0
  %1081 = vmatprep.subr.mxu0 0.0
  %1082 = vmatpush1.msra.mxu0 0.0
  %1083 = vmatprep.subr.mxu0 0.0
  %1084 = vmatpush1.msra.mxu0 0.0
  %1085 = vmatprep.subr.mxu0 0.0
  %1086 = vmatpush1.msra.mxu0 0.0
  %1087 = vmatprep.subr.mxu0 0.0
  %1088 = vmatpush1.msra.mxu0 0.0
  %1089 = vmatprep.mubr.f32.mxu0 0.0
  %1090 = vmatmul.mubr.f32.gmra.mrb[0].mxu0 %v1023
  %v1091 = vpop.f32.mrb[0].mxu0
  %v1092 = vadd.f32 0.0, %v1091
  %v1093 = vpop.f32.mrb[0].mxu0
  %1094 = vdwg.mxu0
  %v1096 = vrot.slane %v1092, 4
  %v1098 = vadd.f32 %v743, %v1096
  %v1099 = vxor.u32 %v1098, 2147483648
  %v1100 = vmul.f32 %v1099, 1.442695
  %v1101 = vpow.pop %v1100
  %v1102 = vadd.f32 %v1101, 1.0
  %v1103 = vrcp.pop %v1102
  %v1104 = vmul.f32 1.0, %v1103
  %1106 = vrot.lane.b32.xlu0 %v1104, 80
  %v1107 = vpop.permute.xlu0 %1106
  %v1109 = vsel %vm211, %v1104, %v1107
  %1110 = vrot.lane.b32.xlu0 %v1104, 112
  %v1111 = vpop.permute.xlu0 %1110
  %1113 = vrot.lane.b32.xlu0 %v1104, 64
  %v1114 = vpop.permute.xlu0 %1113
  %v1116 = vsel %vm211, %v1111, %v1114
  %1117 = vrot.lane.b32.xlu0 %v1104, 32
  %v1118 = vpop.permute.xlu0 %1117
  %v1120 = vsel %vm211, %v1107, %v1118
  %1122 = vrot.lane.b32.xlu0 %v1098, 96
  %v1123 = vpop.permute.xlu0 %1122
  %1125 = vrot.lane.b32.xlu0 %v1098, 48
  %v1126 = vpop.permute.xlu0 %1125
  %v1128 = vsel %vm211, %v1123, %v1126
  %v1129 = vtanh.pop %v1128
  %1131 = vrot.lane.b32.xlu0 %v1014, 16
  %v1132 = vpop.permute.xlu0 %1131
  %v1134 = vsel %vm211, %v998, %v1132
  %v1136 = vrot.slane %v1134, 4
  %v1138 = vmul.f32 %v1116, %v1136
  %v1139 = vmul.f32 %v1109, %v1129
  %v1140 = vadd.f32 %v1138, %v1139
  %v1141 = vtanh.pop %v1140
  %v1142 = vmul.f32 %v1120, %v1141
  %v1144 = vrot.slane %v1142, 4
  %v1146 = vsel %vm401, %v1144, %v994
  %v1148 = vrot.slane %v1140, 4
  %v1150 = vsel %vm401, %v1148, %v998
  %1151 = vrot.lane.b32.xlu0 %v1144, 112
  %v1152 = vpop.permute.xlu0 %1151
  %v1154 = vsel %vm388, %v1152, %v1006
  %1155 = vrot.lane.b32.xlu0 %v1148, 112
  %v1156 = vpop.permute.xlu0 %1155
  %v1158 = vsel %vm388, %v1156, %v1014
  %v1159 = vsel %vm401, %v1144, 0.0
  %v1160 = vsel %vm388, %v1152, 0.0
  %1162 = vrot.lane.b32.xlu0 %v1154, 16
  %v1163 = vpop.permute.xlu0 %1162
  %v1165 = vsel %vm211, %v1146, %v1163
  %v1167 = vsel %vm36, %v1165, 0
  %1169 = vmatprep.subr.mxu0 0.0
  %1170 = vmatpush1.msra.mxu0 %v118
  %1171 = vmatprep.subr.mxu0 0.0
  %1172 = vmatpush1.msra.mxu0 %v119
  %1173 = vmatprep.subr.mxu0 0.0
  %1174 = vmatpush1.msra.mxu0 %v120
  %1175 = vmatprep.subr.mxu0 0.0
  %1176 = vmatpush1.msra.mxu0 %v121
  %1177 = vmatprep.subr.mxu0 0.0
  %1178 = vmatpush1.msra.mxu0 0.0
  %1179 = vmatprep.subr.mxu0 0.0
  %1180 = vmatpush1.msra.mxu0 0.0
  %1181 = vmatprep.subr.mxu0 0.0
  %1182 = vmatpush1.msra.mxu0 0.0
  %1183 = vmatprep.subr.mxu0 0.0
  %1184 = vmatpush1.msra.mxu0 0.0
  %1185 = vmatprep.subr.mxu0 0.0
  %1186 = vmatpush1.msra.mxu0 0.0
  %1187 = vmatprep.subr.mxu0 0.0
  %1188 = vmatpush1.msra.mxu0 0.0
  %1189 = vmatprep.subr.mxu0 0.0
  %1190 = vmatpush1.msra.mxu0 0.0
  %1191 = vmatprep.subr.mxu0 0.0
  %1192 = vmatpush1.msra.mxu0 0.0
  %1193 = vmatprep.subr.mxu0 0.0
  %1194 = vmatpush1.msra.mxu0 0.0
  %1195 = vmatprep.subr.mxu0 0.0
  %1196 = vmatpush1.msra.mxu0 0.0
  %1197 = vmatprep.subr.mxu0 0.0
  %1198 = vmatpush1.msra.mxu0 0.0
  %1199 = vmatprep.subr.mxu0 0.0
  %1200 = vmatpush1.msra.mxu0 0.0
  %1201 = vmatprep.subr.mxu0 0.0
  %1202 = vmatpush1.msra.mxu0 0.0
  %1203 = vmatprep.subr.mxu0 0.0
  %1204 = vmatpush1.msra.mxu0 0.0
  %1205 = vmatprep.subr.mxu0 0.0
  %1206 = vmatpush1.msra.mxu0 0.0
  %1207 = vmatprep.subr.mxu0 0.0
  %1208 = vmatpush1.msra.mxu0 0.0
  %1209 = vmatprep.subr.mxu0 0.0
  %1210 = vmatpush1.msra.mxu0 0.0
  %1211 = vmatprep.subr.mxu0 0.0
  %1212 = vmatpush1.msra.mxu0 0.0
  %1213 = vmatprep.subr.mxu0 0.0
  %1214 = vmatpush1.msra.mxu0 0.0
  %1215 = vmatprep.subr.mxu0 0.0
  %1216 = vmatpush1.msra.mxu0 0.0
  %1217 = vmatprep.subr.mxu0 0.0
  %1218 = vmatpush1.msra.mxu0 0.0
  %1219 = vmatprep.subr.mxu0 0.0
  %1220 = vmatpush1.msra.mxu0 0.0
  %1221 = vmatprep.subr.mxu0 0.0
  %1222 = vmatpush1.msra.mxu0 0.0
  %1223 = vmatprep.subr.mxu0 0.0
  %1224 = vmatpush1.msra.mxu0 0.0
  %1225 = vmatprep.subr.mxu0 0.0
  %1226 = vmatpush1.msra.mxu0 0.0
  %1227 = vmatprep.subr.mxu0 0.0
  %1228 = vmatpush1.msra.mxu0 0.0
  %1229 = vmatprep.subr.mxu0 0.0
  %1230 = vmatpush1.msra.mxu0 0.0
  %1231 = vmatprep.subr.mxu0 0.0
  %1232 = vmatpush1.msra.mxu0 0.0
  %1233 = vmatprep.mubr.f32.mxu0 0.0
  %1234 = vmatmul.mubr.f32.gmra.mrb[0].mxu0 %v1167
  %v1235 = vpop.f32.mrb[0].mxu0
  %v1236 = vadd.f32 0.0, %v1235
  %v1237 = vpop.f32.mrb[0].mxu0
  %1238 = vdwg.mxu0
  %v1240 = vrot.slane %v1236, 2
  %v1242 = vadd.f32 %v872, %v1240
  %v1243 = vxor.u32 %v1242, 2147483648
  %v1244 = vmul.f32 %v1243, 1.442695
  %v1245 = vpow.pop %v1244
  %v1246 = vadd.f32 %v1245, 1.0
  %v1247 = vrcp.pop %v1246
  %v1248 = vmul.f32 1.0, %v1247
  %1250 = vrot.lane.b32.xlu0 %v1248, 80
  %v1251 = vpop.permute.xlu0 %1250
  %v1253 = vsel %vm211, %v1248, %v1251
  %1254 = vrot.lane.b32.xlu0 %v1248, 112
  %v1255 = vpop.permute.xlu0 %1254
  %1257 = vrot.lane.b32.xlu0 %v1248, 64
  %v1258 = vpop.permute.xlu0 %1257
  %v1260 = vsel %vm211, %v1255, %v1258
  %1261 = vrot.lane.b32.xlu0 %v1248, 32
  %v1262 = vpop.permute.xlu0 %1261
  %v1264 = vsel %vm211, %v1251, %v1262
  %1266 = vrot.lane.b32.xlu0 %v1242, 96
  %v1267 = vpop.permute.xlu0 %1266
  %1269 = vrot.lane.b32.xlu0 %v1242, 48
  %v1270 = vpop.permute.xlu0 %1269
  %v1272 = vsel %vm211, %v1267, %v1270
  %v1273 = vtanh.pop %v1272
  %1275 = vrot.lane.b32.xlu0 %v1158, 16
  %v1276 = vpop.permute.xlu0 %1275
  %v1278 = vsel %vm211, %v1150, %v1276
  %v1280 = vrot.slane %v1278, 2
  %v1282 = vmul.f32 %v1260, %v1280
  %v1283 = vmul.f32 %v1253, %v1273
  %v1284 = vadd.f32 %v1282, %v1283
  %v1285 = vtanh.pop %v1284
  %v1286 = vmul.f32 %v1264, %v1285
  %v1288 = vrot.slane %v1286, 6
  %v1290 = vsel %vm254, %v1288, 0.0
  %1291 = vrot.lane.b32.xlu0 %v1288, 112
  %v1292 = vpop.permute.xlu0 %1291
  %v1294 = vsel %vm247, %v1292, 0.0
  %1296 = vrot.lane.b32.xlu0 %v1294, 16
  %v1297 = vpop.permute.xlu0 %1296
  %v1299 = vsel %vm211, %v248, %v1297
  %1301 = vrot.lane.b32.xlu0 %v1160, 16
  %v1302 = vpop.permute.xlu0 %1301
  %v1304 = vsel %vm211, %v418, %v1302
  %1306 = vrot.lane.b32.xlu0 %v1016, 16
  %v1307 = vpop.permute.xlu0 %1306
  %v1309 = vsel %vm211, %v578, %v1307
  %v1310 = vsel %vm211, %v738, %v869
  %1312 = vrot.lane.b32.xlu0 %v739, 16
  %v1313 = vpop.permute.xlu0 %1312
  %v1315 = vsel %vm211, %v868, %v1313
  %1317 = vrot.lane.b32.xlu0 %v579, 16
  %v1318 = vpop.permute.xlu0 %1317
  %v1320 = vsel %vm211, %v1015, %v1318
  %1322 = vrot.lane.b32.xlu0 %v419, 16
  %v1323 = vpop.permute.xlu0 %1322
  %v1325 = vsel %vm211, %v1159, %v1323
  %v1326 = vsel %vm211, %v1290, %v255
  %v1328 = vrot.slane %v1304, 6
  %v1331 = vrot.slane %v1309, 4
  %v1334 = vrot.slane %v1310, 2
  %v1337 = vrot.slane %v1320, 6
  %v1340 = vrot.slane %v1325, 4
  %v1343 = vrot.slane %v1326, 2
  %vm1345 = vcmask 1041408
  %v1346 = vsel %vm1345, %v1299, %v1328
  %vm1347 = vcmask 1043456
  %v1348 = vsel %vm1347, %v1346, %v1331
  %vm1349 = vcmask 1045504
  %v1350 = vsel %vm1349, %v1348, %v1334
  %v1351 = vsel %vm1345, %v1315, %v1337
  %v1352 = vsel %vm1347, %v1351, %v1340
  %v1353 = vsel %vm1349, %v1352, %v1343
  %v1354 = vld [vmem:[%s5] sm:$0xff]
  %v1355 = vld [vmem:[%s5 + $0x8] sm:$0xff]
  %v1356 = vld [vmem:[%s5 + $0x10] sm:$0xff]
  %v1357 = vld [vmem:[%s5 + $0x18] sm:$0xff]
  %v1359 = vsel %vm36, %v1350, 0
  %v1362 = vsel %vm36, %v1353, 0
  %1364 = vmatprep.subr.mxu0 0.0
  %1365 = vmatpush1.msra.mxu0 %v1354
  %1366 = vmatprep.subr.mxu0 0.0
  %1367 = vmatpush1.msra.mxu0 %v1355
  %1368 = vmatprep.subr.mxu0 0.0
  %1369 = vmatpush1.msra.mxu0 %v1356
  %1370 = vmatprep.subr.mxu0 0.0
  %1371 = vmatpush1.msra.mxu0 %v1357
  %1372 = vmatprep.subr.mxu0 0.0
  %1373 = vmatpush1.msra.mxu0 0.0
  %1374 = vmatprep.subr.mxu0 0.0
  %1375 = vmatpush1.msra.mxu0 0.0
  %1376 = vmatprep.subr.mxu0 0.0
  %1377 = vmatpush1.msra.mxu0 0.0
  %1378 = vmatprep.subr.mxu0 0.0
  %1379 = vmatpush1.msra.mxu0 0.0
  %1380 = vmatprep.subr.mxu0 0.0
  %1381 = vmatpush1.msra.mxu0 0.0
  %1382 = vmatprep.subr.mxu0 0.0
  %1383 = vmatpush1.msra.mxu0 0.0
  %1384 = vmatprep.subr.mxu0 0.0
  %1385 = vmatpush1.msra.mxu0 0.0
  %1386 = vmatprep.subr.mxu0 0.0
  %1387 = vmatpush1.msra.mxu0 0.0
  %1388 = vmatprep.subr.mxu0 0.0
  %1389 = vmatpush1.msra.mxu0 0.0
  %1390 = vmatprep.subr.mxu0 0.0
  %1391 = vmatpush1.msra.mxu0 0.0
  %1392 = vmatprep.subr.mxu0 0.0
  %1393 = vmatpush1.msra.mxu0 0.0
  %1394 = vmatprep.subr.mxu0 0.0
  %1395 = vmatpush1.msra.mxu0 0.0
  %1396 = vmatprep.subr.mxu0 0.0
  %1397 = vmatpush1.msra.mxu0 0.0
  %1398 = vmatprep.subr.mxu0 0.0
  %1399 = vmatpush1.msra.mxu0 0.0
  %1400 = vmatprep.subr.mxu0 0.0
  %1401 = vmatpush1.msra.mxu0 0.0
  %1402 = vmatprep.subr.mxu0 0.0
  %1403 = vmatpush1.msra.mxu0 0.0
  %1404 = vmatprep.subr.mxu0 0.0
  %1405 = vmatpush1.msra.mxu0 0.0
  %1406 = vmatprep.subr.mxu0 0.0
  %1407 = vmatpush1.msra.mxu0 0.0
  %1408 = vmatprep.subr.mxu0 0.0
  %1409 = vmatpush1.msra.mxu0 0.0
  %1410 = vmatprep.subr.mxu0 0.0
  %1411 = vmatpush1.msra.mxu0 0.0
  %1412 = vmatprep.subr.mxu0 0.0
  %1413 = vmatpush1.msra.mxu0 0.0
  %1414 = vmatprep.subr.mxu0 0.0
  %1415 = vmatpush1.msra.mxu0 0.0
  %1416 = vmatprep.subr.mxu0 0.0
  %1417 = vmatpush1.msra.mxu0 0.0
  %1418 = vmatprep.subr.mxu0 0.0
  %1419 = vmatpush1.msra.mxu0 0.0
  %1420 = vmatprep.subr.mxu0 0.0
  %1421 = vmatpush1.msra.mxu0 0.0
  %1422 = vmatprep.subr.mxu0 0.0
  %1423 = vmatpush1.msra.mxu0 0.0
  %1424 = vmatprep.subr.mxu0 0.0
  %1425 = vmatpush1.msra.mxu0 0.0
  %1426 = vmatprep.subr.mxu0 0.0
  %1427 = vmatpush1.msra.mxu0 0.0
  %1428 = vmatprep.mubr.f32.mxu0 0.0
  %1429 = vmatmul.mubr.f32.gmra.mrb[0].mxu0 %v1359
  %v1430 = vpop.f32.mrb[0].mxu0
  %v1431 = vadd.f32 0.0, %v1430
  %v1432 = vpop.f32.mrb[0].mxu0
  %1433 = vmatprep.mubr.f32.mxu0 0.0
  %1434 = vmatmul.mubr.f32.gmra.mrb[0].mxu0 %v1362
  %v1435 = vpop.f32.mrb[0].mxu0
  %v1436 = vadd.f32 0.0, %v1435
  %v1437 = vpop.f32.mrb[0].mxu0
  %1438 = vdwg.mxu0
  %vm1439 = vcmask 64512
  %v1440 = vsel %vm1439, %v1431, -inf
  %1441 = vmax.xlane.f32.xlu0 %v1440
  %v1442 = vpop.xlane.xlu0 %1441
  %v1443 = vsel %vm1439, %v1436, -inf
  %1444 = vmax.xlane.f32.xlu0 %v1443
  %v1445 = vpop.xlane.xlu0 %1444
  %v1446 = vlaneseq
  %v1447 = vand.u32 %v1446, 127
  %vm1448 = vcmp.ge.f32.partialorder %v1431, %v1442
  %vm1449 = vcmp.ge.f32.partialorder %v1436, %v1445
  %v1450 = vsel %vm1448, %v1447, 8
  %v1451 = vsel %vm1449, %v1447, 8
  %v1452 = vsel %vm1439, %v1450, 2147483647
  %v1453 = vand.u32 %v1452, 65535
  %v1454 = vshra.s32 %v1452, 16
  %v1455 = vcvt.s32.f32 %v1453
  %v1456 = vcvt.s32.f32 %v1454
  %1457 = vmin.xlane.f32.xlu0 %v1456
  %v1458 = vpop.xlane.xlu0 %1457
  %vm1459 = vcmp.eq.f32.partialorder %v1456, %v1458
  %v1460 = vsel %vm1459, %v1455, inf
  %1461 = vmin.xlane.f32.xlu0 %v1460
  %v1462 = vpop.xlane.xlu0 %1461
  %v1463 = vcvt.f32.s32 %v1462
  %v1464 = vcvt.f32.s32 %v1458
  %v1465 = vshll.u32 %v1464, 16
  %v1466 = vadd.s32 %v1465, %v1463
  %v1467 = vsel %vm1439, %v1451, 2147483647
  %v1468 = vand.u32 %v1467, 65535
  %v1469 = vshra.s32 %v1467, 16
  %v1470 = vcvt.s32.f32 %v1468
  %v1471 = vcvt.s32.f32 %v1469
  %1472 = vmin.xlane.f32.xlu0 %v1471
  %v1473 = vpop.xlane.xlu0 %1472
  %vm1474 = vcmp.eq.f32.partialorder %v1471, %v1473
  %v1475 = vsel %vm1474, %v1470, inf
  %1476 = vmin.xlane.f32.xlu0 %v1475
  %v1477 = vpop.xlane.xlu0 %1476
  %v1478 = vcvt.f32.s32 %v1477
  %v1479 = vcvt.f32.s32 %v1473
  %v1480 = vshll.u32 %v1479, 16
  %v1481 = vadd.s32 %v1480, %v1478
  %vm1482 = vcmask 7168
  %1483 = vst.msk [vmem:[%s6] sm:$0xff] %vm1482, %v1466
  %1484 = vst.msk [vmem:[%s6 + $0x8] sm:$0xff] %vm1482, %v1481
  // Predicated region
  $region26: #{bilstm_forward.1} parent=0 // pred_check
    _
  $region27: #{bilstm_forward.1} parent=0 // pred_check_branch
    %1486 = sbr.rel (0) target = $region29
  $region28: #{bilstm_forward.1} parent=0 // pred_region
    _
  $region29: #{bilstm_forward.1} parent=0 // pred_fallthru
    _
  // Predicated region
  $region30: #{bilstm_forward.1} parent=0 // pred_check
    _
  $region31: #{bilstm_forward.1} parent=0 // pred_check_branch
    %1488 = sbr.rel (0) target = $region33
  $region32: #{bilstm_forward.1} parent=0 // pred_region
    _
  $region33: #{bilstm_forward.1} parent=0 // pred_fallthru
    _

</llo_original>
